<compile_context>
chip_gen: v6e
topology: v6e:2x2x1
jax: 0.10.0
libtpu: 0.0.40
codegen_flags: <defaults>
</compile_context>

<pallas_src>
import jax
import jax.numpy as jnp
from jax.experimental import pallas as pl
from jax.experimental.pallas import tpu as pltpu

_LANE = 128     # vreg lane width
_SUBLANE = 8    # f32 sublane count
_TB_CAP = 4096  # max batch-tile rows (keeps x+out double-buffers < ~8 MiB VMEM)


def _round_up(n, m):
    return ((n + m - 1) // m) * m


def _use_bf16_epilogue():
    """bf16 VPU/EUP exist on v6e/v7x; v5e and older lack them -> keep f32."""
    try:
        kind = jax.devices()[0].device_kind.lower()
    except Exception:
        return False
    return ("v6" in kind) or ("v7" in kind) or ("7x" in kind)


def _choose_batch_tiling(B):
    """Pick (tb, n_tiles): tb multiple of 8, n_tiles even (>=2) so both v7x
    TensorCores get work, tb <= _TB_CAP, minimal padding.  For B=256 this is
    (128, 2) -> no padding, whole per-core batch in one tile."""
    B8 = _round_up(max(B, 1), _SUBLANE)
    if B8 <= _SUBLANE:
        return _SUBLANE, 1
    n = max(2, 2 * (-(-B8 // (2 * _TB_CAP))))      # smallest even tile count
    tb = _round_up(-(-B8 // n), _SUBLANE)
    return tb, n


def autoencoder_kernel(x_ref,
                       wg_ref, bg_ref,
                       wh_ref, bh_ref,
                       wi_ref, bi_ref,
                       wj_ref, bj_ref,
                       out_ref):
    """Fused forward pass: four bf16 MXU matmuls with f32 accumulation; the
    bias-add + tanh-form sigmoid epilogue runs in the bias dtype (bf16 on
    v6e/v7x, f32 on v5e)."""
    def layer(a_bf16, w_ref, b_ref):
        z = jnp.dot(a_bf16, w_ref[...], preferred_element_type=jnp.float32)
        z = z.astype(b_ref.dtype) + b_ref[...]
        # sigmoid(z) = 0.5*tanh(0.5*z) + 0.5 : one EUP op instead of exp+recip.
        return 0.5 * jnp.tanh(0.5 * z) + 0.5

    x = x_ref[...].astype(jnp.bfloat16)                                   # (TB, Qp)
    a = layer(x, wg_ref, bg_ref)
    a = layer(a.astype(jnp.bfloat16), wh_ref, bh_ref)
    a = layer(a.astype(jnp.bfloat16), wi_ref, bi_ref)
    a = layer(a.astype(jnp.bfloat16), wj_ref, bj_ref)
    out_ref[...] = a.astype(out_ref.dtype)                                # (TB, Qp)


def prepare_params(params, epilogue_dtype=jnp.float32):
    """One-time layout prep (hoisted out of the per-call wrapper).

    - Transpose PyTorch (out, in) weights to (in, out) so the kernel does x @ W.
    - Zero-pad every feature dim up to a multiple of 128 (lane width).
    - Cast weights to bf16 for the MXU; biases to the epilogue dtype as (1, k).
    Padding is exact: padded biases are 0 and padded weight rows of the
    consuming layer are 0, so padded activation lanes (sigmoid(0)=0.5) never
    contribute to real outputs.
    """
    k1, Q = params["g_w"].shape
    k2 = params["h_w"].shape[0]
    Qp, k1p, k2p = (_round_up(d, _LANE) for d in (Q, k1, k2))

    def prep_w(w, rows, cols):                  # (out, in) -> padded (in, out) bf16
        wt = w.T
        wt = jnp.pad(wt, ((0, rows - wt.shape[0]), (0, cols - wt.shape[1])))
        return wt.astype(jnp.bfloat16)

    def prep_b(b, cols):                        # (out,) -> padded (1, out)
        return jnp.pad(b, (0, cols - b.shape[0])).reshape(1, cols).astype(epilogue_dtype)

    return dict(
        dims=(Q, k1, k2, Qp, k1p, k2p),
        wg=prep_w(params["g_w"], Qp, k1p),  bg=prep_b(params["g_b"], k1p),
        wh=prep_w(params["h_w"], k1p, k2p), bh=prep_b(params["h_b"], k2p),
        wi=prep_w(params["i_w"], k2p, k1p), bi=prep_b(params["i_b"], k1p),
        wj=prep_w(params["j_w"], k1p, Qp),  bj=prep_b(params["j_b"], Qp),
    )


def autoencoder_forward(x, prep):
    """x: (B, num_question) f32; prep: output of prepare_params()."""
    B, Q = x.shape
    Q_, k1, k2, Qp, k1p, k2p = prep["dims"]
    assert Q == Q_, "input feature dim mismatch"

    tb, n_tiles = _choose_batch_tiling(B)
    Bp = tb * n_tiles
    grid = (n_tiles,)

    # Pad only when needed (the demo shapes hit the no-pad / no-slice path).
    # TODO(synk): for ragged B%tb != 0 an in-kernel masked tail store would
    # avoid this extra HBM pass over x/out.
    needs_pad = (Bp, Qp) != (B, Q)
    xp = jnp.pad(x, ((0, Bp - B), (0, Qp - Q))) if needs_pad else x

    # Constant index_map -> block never changes -> weights/biases stay resident
    # in VMEM; only x/out tiles stream through the pipeline.
    def resident(shape):
        return pl.BlockSpec(shape, lambda i: (0, 0))

    # Cost estimate reflects executed (padded) work: 4 matmuls + 1 tanh per
    # activation element.
    flops = 2 * Bp * (Qp * k1p + k1p * k2p + k2p * k1p + k1p * Qp)
    transcendentals = Bp * (k1p + k2p + k1p + Qp)
    itemsize = jnp.dtype(x.dtype).itemsize
    bytes_accessed = (
        Bp * Qp * itemsize * 2   # streamed x + out
        + sum(int(prep[k].size) * prep[k].dtype.itemsize
              for k in ("wg", "wh", "wi", "wj", "bg", "bh", "bi", "bj")))

    out = pl.pallas_call(
        autoencoder_kernel,
        out_shape=jax.ShapeDtypeStruct((Bp, Qp), x.dtype),
        grid=grid,
        in_specs=[
            pl.BlockSpec((tb, Qp), lambda i: (i, 0)),   # x: streamed per batch tile
            resident((Qp, k1p)),  resident((1, k1p)),   # g
            resident((k1p, k2p)), resident((1, k2p)),   # h
            resident((k2p, k1p)), resident((1, k1p)),   # i
            resident((k1p, Qp)),  resident((1, Qp)),    # j
        ],
        out_specs=pl.BlockSpec((tb, Qp), lambda i: (i, 0)),
        compiler_params=pltpu.CompilerParams(
            dimension_semantics=("parallel",)),
        cost_estimate=pl.CostEstimate(
            flops=flops, transcendentals=transcendentals,
            bytes_accessed=bytes_accessed),
    )(xp, prep["wg"], prep["bg"], prep["wh"], prep["bh"],
      prep["wi"], prep["bi"], prep["wj"], prep["bj"])
    return out[:B, :Q] if needs_pad else out


def init_params(key, num_question, k1, k2):
    """Deterministic init mimicking nn.Linear (uniform +-1/sqrt(fan_in))."""
    def linear_init(k, out_f, in_f):
        kw, kb = jax.random.split(k)
        bound = 1.0 / jnp.sqrt(in_f)
        w = jax.random.uniform(kw, (out_f, in_f), jnp.float32, -bound, bound)
        b = jax.random.uniform(kb, (out_f,), jnp.float32, -bound, bound)
        return w, b

    kg, kh, ki, kj = jax.random.split(key, 4)
    g_w, g_b = linear_init(kg, k1, num_question)
    h_w, h_b = linear_init(kh, k2, k1)
    i_w, i_b = linear_init(ki, k1, k2)
    j_w, j_b = linear_init(kj, num_question, k1)
    return dict(g_w=g_w, g_b=g_b, h_w=h_w, h_b=h_b,
                i_w=i_w, i_b=i_b, j_w=j_w, j_b=j_b)


def reference_forward(x, p):
    a = jax.nn.sigmoid(x @ p["g_w"].T + p["g_b"])
    a = jax.nn.sigmoid(a @ p["h_w"].T + p["h_b"])
    a = jax.nn.sigmoid(a @ p["i_w"].T + p["i_b"])
    a = jax.nn.sigmoid(a @ p["j_w"].T + p["j_b"])
    return a


if __name__ == "__main__":
    num_question, k1, k2 = 128, 64, 32
    batch = 256          # -> 2 batch tiles of 128 rows (one per TC on v7x)

    key = jax.random.PRNGKey(0)
    kx, kp = jax.random.split(key)
    x = jax.random.uniform(kx, (batch, num_question), jnp.float32)
    params = init_params(kp, num_question, k1, k2)

    epilogue_dtype = jnp.bfloat16 if _use_bf16_epilogue() else jnp.float32
    prep = prepare_params(params, epilogue_dtype)   # one-time layout prep

    out = autoencoder_forward(x, prep)
    out = jax.block_until_ready(out)

    ref = reference_forward(x, params)   # pure f32 reference
    assert out.shape == (batch, num_question)
    # bf16 matmul operands (+ bf16 epilogue on v6e/v7x) -> loose but meaningful tol.
    max_err = float(jnp.max(jnp.abs(out - ref)))
    assert max_err < 5e-2, f"mismatch vs pure-JAX reference (max err {max_err})"
    print("KERNEL_OK")
</pallas_src>

<mosaic_0001>
module attributes {stable_mosaic.version = 11 : i64} {
  func.func @autoencoder_kernel(%arg0: i32, %arg1: memref<128x128xf32, #tpu.memory_space<vmem>>, %arg2: memref<128x128xbf16, #tpu.memory_space<vmem>>, %arg3: memref<1x128xf32, #tpu.memory_space<vmem>>, %arg4: memref<128x128xbf16, #tpu.memory_space<vmem>>, %arg5: memref<1x128xf32, #tpu.memory_space<vmem>>, %arg6: memref<128x128xbf16, #tpu.memory_space<vmem>>, %arg7: memref<1x128xf32, #tpu.memory_space<vmem>>, %arg8: memref<128x128xbf16, #tpu.memory_space<vmem>>, %arg9: memref<1x128xf32, #tpu.memory_space<vmem>>, %arg10: memref<128x128xf32, #tpu.memory_space<vmem>>) attributes {dimension_semantics = [#tpu.dimension_semantics<parallel>], iteration_bounds = array<i64: 2>, scalar_prefetch = 0 : i64, scratch_operands = 0 : i64, tpu.core_type = #tpu.core_type<tc>, window_params = [{transform_indices = @transform_0, window_bounds = array<i64: 128, 128>}, {pipeline_mode = #tpu.pipeline_mode<synchronous>, transform_indices = @transform_1, window_bounds = array<i64: 128, 128>}, {pipeline_mode = #tpu.pipeline_mode<synchronous>, transform_indices = @transform_2, window_bounds = array<i64: 1, 128>}, {pipeline_mode = #tpu.pipeline_mode<synchronous>, transform_indices = @transform_3, window_bounds = array<i64: 128, 128>}, {pipeline_mode = #tpu.pipeline_mode<synchronous>, transform_indices = @transform_4, window_bounds = array<i64: 1, 128>}, {pipeline_mode = #tpu.pipeline_mode<synchronous>, transform_indices = @transform_5, window_bounds = array<i64: 128, 128>}, {pipeline_mode = #tpu.pipeline_mode<synchronous>, transform_indices = @transform_6, window_bounds = array<i64: 1, 128>}, {pipeline_mode = #tpu.pipeline_mode<synchronous>, transform_indices = @transform_7, window_bounds = array<i64: 128, 128>}, {pipeline_mode = #tpu.pipeline_mode<synchronous>, transform_indices = @transform_8, window_bounds = array<i64: 1, 128>}, {transform_indices = @transform_9, window_bounds = array<i64: 128, 128>}]} {
    %c0 = arith.constant 0 : index
    %c0_0 = arith.constant 0 : index
    %0 = vector.load %arg1[%c0, %c0_0] : memref<128x128xf32, #tpu.memory_space<vmem>>, vector<128x128xf32>
    %1 = arith.truncf %0 : vector<128x128xf32> to vector<128x128xbf16>
    %c0_1 = arith.constant 0 : index
    %c0_2 = arith.constant 0 : index
    %2 = vector.load %arg2[%c0_1, %c0_2] : memref<128x128xbf16, #tpu.memory_space<vmem>>, vector<128x128xbf16>
    %cst = arith.constant dense<0.000000e+00> : vector<128x128xf32>
    %3 = tpu.matmul %1, %2, %cst {dimension_numbers = #tpu.dot_dimension_numbers<[1], [0], [0], [1], [0, 0, 1, 1], [], []>} : vector<128x128xbf16>, vector<128x128xbf16>, vector<128x128xf32> -> vector<128x128xf32>
    %c0_3 = arith.constant 0 : index
    %c0_4 = arith.constant 0 : index
    %4 = vector.load %arg3[%c0_3, %c0_4] : memref<1x128xf32, #tpu.memory_space<vmem>>, vector<1x128xf32>
    %5 = vector.broadcast %4 : vector<1x128xf32> to vector<128x128xf32>
    %6 = arith.addf %3, %5 : vector<128x128xf32>
    %cst_5 = arith.constant 5.000000e-01 : f32
    %7 = vector.broadcast %cst_5 : f32 to vector<128x128xf32>
    %8 = arith.mulf %7, %6 : vector<128x128xf32>
    %9 = math.tanh %8 : vector<128x128xf32>
    %cst_6 = arith.constant 5.000000e-01 : f32
    %10 = vector.broadcast %cst_6 : f32 to vector<128x128xf32>
    %11 = arith.mulf %10, %9 : vector<128x128xf32>
    %cst_7 = arith.constant 5.000000e-01 : f32
    %12 = vector.broadcast %cst_7 : f32 to vector<128x128xf32>
    %13 = arith.addf %11, %12 : vector<128x128xf32>
    %14 = arith.truncf %13 : vector<128x128xf32> to vector<128x128xbf16>
    %c0_8 = arith.constant 0 : index
    %c0_9 = arith.constant 0 : index
    %15 = vector.load %arg4[%c0_8, %c0_9] : memref<128x128xbf16, #tpu.memory_space<vmem>>, vector<128x128xbf16>
    %cst_10 = arith.constant dense<0.000000e+00> : vector<128x128xf32>
    %16 = tpu.matmul %14, %15, %cst_10 {dimension_numbers = #tpu.dot_dimension_numbers<[1], [0], [0], [1], [0, 0, 1, 1], [], []>} : vector<128x128xbf16>, vector<128x128xbf16>, vector<128x128xf32> -> vector<128x128xf32>
    %c0_11 = arith.constant 0 : index
    %c0_12 = arith.constant 0 : index
    %17 = vector.load %arg5[%c0_11, %c0_12] : memref<1x128xf32, #tpu.memory_space<vmem>>, vector<1x128xf32>
    %18 = vector.broadcast %17 : vector<1x128xf32> to vector<128x128xf32>
    %19 = arith.addf %16, %18 : vector<128x128xf32>
    %cst_13 = arith.constant 5.000000e-01 : f32
    %20 = vector.broadcast %cst_13 : f32 to vector<128x128xf32>
    %21 = arith.mulf %20, %19 : vector<128x128xf32>
    %22 = math.tanh %21 : vector<128x128xf32>
    %cst_14 = arith.constant 5.000000e-01 : f32
    %23 = vector.broadcast %cst_14 : f32 to vector<128x128xf32>
    %24 = arith.mulf %23, %22 : vector<128x128xf32>
    %cst_15 = arith.constant 5.000000e-01 : f32
    %25 = vector.broadcast %cst_15 : f32 to vector<128x128xf32>
    %26 = arith.addf %24, %25 : vector<128x128xf32>
    %27 = arith.truncf %26 : vector<128x128xf32> to vector<128x128xbf16>
    %c0_16 = arith.constant 0 : index
    %c0_17 = arith.constant 0 : index
    %28 = vector.load %arg6[%c0_16, %c0_17] : memref<128x128xbf16, #tpu.memory_space<vmem>>, vector<128x128xbf16>
    %cst_18 = arith.constant dense<0.000000e+00> : vector<128x128xf32>
    %29 = tpu.matmul %27, %28, %cst_18 {dimension_numbers = #tpu.dot_dimension_numbers<[1], [0], [0], [1], [0, 0, 1, 1], [], []>} : vector<128x128xbf16>, vector<128x128xbf16>, vector<128x128xf32> -> vector<128x128xf32>
    %c0_19 = arith.constant 0 : index
    %c0_20 = arith.constant 0 : index
    %30 = vector.load %arg7[%c0_19, %c0_20] : memref<1x128xf32, #tpu.memory_space<vmem>>, vector<1x128xf32>
    %31 = vector.broadcast %30 : vector<1x128xf32> to vector<128x128xf32>
    %32 = arith.addf %29, %31 : vector<128x128xf32>
    %cst_21 = arith.constant 5.000000e-01 : f32
    %33 = vector.broadcast %cst_21 : f32 to vector<128x128xf32>
    %34 = arith.mulf %33, %32 : vector<128x128xf32>
    %35 = math.tanh %34 : vector<128x128xf32>
    %cst_22 = arith.constant 5.000000e-01 : f32
    %36 = vector.broadcast %cst_22 : f32 to vector<128x128xf32>
    %37 = arith.mulf %36, %35 : vector<128x128xf32>
    %cst_23 = arith.constant 5.000000e-01 : f32
    %38 = vector.broadcast %cst_23 : f32 to vector<128x128xf32>
    %39 = arith.addf %37, %38 : vector<128x128xf32>
    %40 = arith.truncf %39 : vector<128x128xf32> to vector<128x128xbf16>
    %c0_24 = arith.constant 0 : index
    %c0_25 = arith.constant 0 : index
    %41 = vector.load %arg8[%c0_24, %c0_25] : memref<128x128xbf16, #tpu.memory_space<vmem>>, vector<128x128xbf16>
    %cst_26 = arith.constant dense<0.000000e+00> : vector<128x128xf32>
    %42 = tpu.matmul %40, %41, %cst_26 {dimension_numbers = #tpu.dot_dimension_numbers<[1], [0], [0], [1], [0, 0, 1, 1], [], []>} : vector<128x128xbf16>, vector<128x128xbf16>, vector<128x128xf32> -> vector<128x128xf32>
    %c0_27 = arith.constant 0 : index
    %c0_28 = arith.constant 0 : index
    %43 = vector.load %arg9[%c0_27, %c0_28] : memref<1x128xf32, #tpu.memory_space<vmem>>, vector<1x128xf32>
    %44 = vector.broadcast %43 : vector<1x128xf32> to vector<128x128xf32>
    %45 = arith.addf %42, %44 : vector<128x128xf32>
    %cst_29 = arith.constant 5.000000e-01 : f32
    %46 = vector.broadcast %cst_29 : f32 to vector<128x128xf32>
    %47 = arith.mulf %46, %45 : vector<128x128xf32>
    %48 = math.tanh %47 : vector<128x128xf32>
    %cst_30 = arith.constant 5.000000e-01 : f32
    %49 = vector.broadcast %cst_30 : f32 to vector<128x128xf32>
    %50 = arith.mulf %49, %48 : vector<128x128xf32>
    %cst_31 = arith.constant 5.000000e-01 : f32
    %51 = vector.broadcast %cst_31 : f32 to vector<128x128xf32>
    %52 = arith.addf %50, %51 : vector<128x128xf32>
    %c0_32 = arith.constant 0 : index
    %c0_33 = arith.constant 0 : index
    %53 = vector.load %arg10[%c0_32, %c0_33] : memref<128x128xf32, #tpu.memory_space<vmem>>, vector<128x128xf32>
    tpu.vector_store %arg10[%c0_32, %c0_33], %52 {strides = array<i32>} : memref<128x128xf32, #tpu.memory_space<vmem>>, vector<128x128xf32>,
    return
  }
  func.func @transform_0(%arg0: i32) -> (i32, i32) {
    %c0_i32 = arith.constant 0 : i32
    %c0_i32_0 = arith.constant 0 : i32
    return %arg0, %c0_i32 : i32, i32
  }
  func.func @transform_1(%arg0: i32) -> (i32, i32) {
    %c0_i32 = arith.constant 0 : i32
    %c0_i32_0 = arith.constant 0 : i32
    %c0_i32_1 = arith.constant 0 : i32
    return %c0_i32, %c0_i32_0 : i32, i32
  }
  func.func @transform_2(%arg0: i32) -> (i32, i32) {
    %c0_i32 = arith.constant 0 : i32
    %c0_i32_0 = arith.constant 0 : i32
    %c0_i32_1 = arith.constant 0 : i32
    return %c0_i32, %c0_i32_0 : i32, i32
  }
  func.func @transform_3(%arg0: i32) -> (i32, i32) {
    %c0_i32 = arith.constant 0 : i32
    %c0_i32_0 = arith.constant 0 : i32
    %c0_i32_1 = arith.constant 0 : i32
    return %c0_i32, %c0_i32_0 : i32, i32
  }
  func.func @transform_4(%arg0: i32) -> (i32, i32) {
    %c0_i32 = arith.constant 0 : i32
    %c0_i32_0 = arith.constant 0 : i32
    %c0_i32_1 = arith.constant 0 : i32
    return %c0_i32, %c0_i32_0 : i32, i32
  }
  func.func @transform_5(%arg0: i32) -> (i32, i32) {
    %c0_i32 = arith.constant 0 : i32
    %c0_i32_0 = arith.constant 0 : i32
    %c0_i32_1 = arith.constant 0 : i32
    return %c0_i32, %c0_i32_0 : i32, i32
  }
  func.func @transform_6(%arg0: i32) -> (i32, i32) {
    %c0_i32 = arith.constant 0 : i32
    %c0_i32_0 = arith.constant 0 : i32
    %c0_i32_1 = arith.constant 0 : i32
    return %c0_i32, %c0_i32_0 : i32, i32
  }
  func.func @transform_7(%arg0: i32) -> (i32, i32) {
    %c0_i32 = arith.constant 0 : i32
    %c0_i32_0 = arith.constant 0 : i32
    %c0_i32_1 = arith.constant 0 : i32
    return %c0_i32, %c0_i32_0 : i32, i32
  }
  func.func @transform_8(%arg0: i32) -> (i32, i32) {
    %c0_i32 = arith.constant 0 : i32
    %c0_i32_0 = arith.constant 0 : i32
    %c0_i32_1 = arith.constant 0 : i32
    return %c0_i32, %c0_i32_0 : i32, i32
  }
  func.func @transform_9(%arg0: i32) -> (i32, i32) {
    %c0_i32 = arith.constant 0 : i32
    %c0_i32_0 = arith.constant 0 : i32
    return %arg0, %c0_i32 : i32, i32
  }
}

</mosaic_0001>

<llo_original>
// kernel: tpu_custom_call.1
$region0: #{tpu_custom_call.1}
  #allocation0 [shape = 'u32[]', space=smem, size = 0x4, offset = 0x4, fixed_abs, tag = 'smem constant byte address 0x4 - core index']
  #allocation1 [shape = 'u32[144,128]{1,0:T(1,128)}', space=vmem, size = 0x12000, scoped, tag = 'internal scratch']
  %s0 = inlined_call_operand.hbm [shape: f32[256,128], index: 0, kind: input, shape index: {}]
  %s1 = inlined_call_operand.hbm [shape: bf16[128,128], index: 1, kind: input, shape index: {}]
  %s2 = inlined_call_operand.vmem [shape: f32[1,128], index: 2, kind: input, shape index: {}]
  %s3 = inlined_call_operand.hbm [shape: bf16[128,128], index: 3, kind: input, shape index: {}]
  %s4 = inlined_call_operand.vmem [shape: f32[1,128], index: 4, kind: input, shape index: {}]
  %s5 = inlined_call_operand.hbm [shape: bf16[128,128], index: 5, kind: input, shape index: {}]
  %s6 = inlined_call_operand.vmem [shape: f32[1,128], index: 6, kind: input, shape index: {}]
  %s7 = inlined_call_operand.hbm [shape: bf16[128,128], index: 7, kind: input, shape index: {}]
  %s8 = inlined_call_operand.vmem [shape: f32[1,128], index: 8, kind: input, shape index: {}]
  %s9 = inlined_call_operand.hbm [shape: f32[256,128], index: 9, kind: output, shape index: {}]
  %s10 = sld [smem:[#allocation0]]
  $region89: #{tpu_custom_call.1} parent=0
    _
  %s12 = ssub.s32 1, %s10
  %s13 = scalar_select 0, %s12, %s10
  $region1: #{tpu_custom_call.1} parent=0
    #allocation2 [shape = 'u8[131072]{0}', space=vmem, size = 0x20000, scoped, tag = 'input window, operand 0']
    #allocation3 [shape = 's32[2]{0}', space=sflag, size = 0x8, scoped, tag = 'scoped memory for tpu_custom_call.1']
    #allocation4 [shape = 's32[2]{0}', space=sflag, size = 0x8, scoped, tag = 'scoped memory for tpu_custom_call.1']
    #allocation5 [shape = 'u8[32768]{0}', space=vmem, size = 0x8000, scoped, tag = 'input window, operand 1, single buffered']
    #allocation6 [shape = 's32[1]{0}', space=sflag, size = 0x4, scoped, tag = 'scoped memory for tpu_custom_call.1']
    #allocation7 [shape = 'u8[32768]{0}', space=vmem, size = 0x8000, scoped, tag = 'input window, operand 3, single buffered']
    #allocation8 [shape = 'u8[32768]{0}', space=vmem, size = 0x8000, scoped, tag = 'input window, operand 5, single buffered']
    #allocation9 [shape = 's32[1]{0}', space=sflag, size = 0x4, scoped, tag = 'scoped memory for tpu_custom_call.1']
    #allocation10 [shape = 'u8[32768]{0}', space=vmem, size = 0x8000, scoped, tag = 'input window, operand 7, single buffered']
    #allocation11 [shape = 'u8[131072]{0}', space=vmem, size = 0x20000, scoped, tag = 'output window, operand 0']
    %14 = vsyncpa [#allocation3], 0
    %s15 = scalar_lea.sflag [#allocation3], 1
    %16 = vsyncpa %s15, 0
    %17 = vsyncpa [#allocation6], 0
    %18 = vsyncpa [#allocation9], 0
    %19 = vsyncpa [#allocation4], 0
    %s20 = scalar_lea.sflag [#allocation4], 1
    %21 = vsyncpa %s20, 0
    loop: start=0, step=1, limit=4
    $region2: #{tpu_custom_call.1} parent=1 // loop_pre_header
      _
    $region3: #{tpu_custom_call.1} parent=1 // loop_header
      %s23 = sphi 0, %s27
      %p24 = scmp.ge.s32.totalorder %s23, 4
      %s33 = sphi 0, %s35
      %s36 = sphi 0, %s33
      %s37 = sphi 0, %s36
      %s53 = sphi 0, %s37
      %s57 = sphi 0, %s57
      %s59 = sphi 0, %s57
      %s60 = sphi 0, %s59
      %s74 = sphi 0, %s60
      %s78 = sphi 0, %s78
      %s80 = sphi 0, %s78
      %s81 = sphi 0, %s80
      %s95 = sphi 0, %s81
      %s99 = sphi 0, %s99
      %s101 = sphi 0, %s99
      %s102 = sphi 0, %s101
      %s116 = sphi 0, %s102
      %s120 = sphi 0, %s120
      %s122 = sphi 0, %s120
      %s123 = sphi 0, %s122
      %s137 = sphi 0, %s123
      %s141 = sphi 0, %s141
      %s143 = sphi 0, %s141
      %s144 = sphi 0, %s143
      %s158 = sphi 0, %s144
      %s162 = sphi 0, %s162
      %s164 = sphi 0, %s162
      %s165 = sphi 0, %s164
      %s179 = sphi 0, %s165
      %s183 = sphi 0, %s183
      %s185 = sphi 0, %s183
      %s186 = sphi 0, %s185
      %s200 = sphi 0, %s186
      %s204 = sphi 0, %s204
      %s206 = sphi 0, %s204
      %s207 = sphi 0, %s206
      %s221 = sphi 0, %s207
      %s227 = sphi 0, %s229
      %s230 = sphi 0, %s227
      %s231 = sphi 0, %s230
      %s247 = sphi 0, %s231
    $region4: #{tpu_custom_call.1} parent=1 // loop_header_branch
      %26 = sbr.rel (%p24) target = $region8
    $region5: #{tpu_custom_call.1} parent=1 // loop_body
      %s28 = ssub.s32 %s23, 1
      %s29 = ssub.s32 %s23, 2
      %s30 = sadd.s32 %s23, 1
      %s31 = ssub.s32 %s23, %s30
      %p32 = scmp.eq.s32.totalorder %s31, 0
      %s34 = sadd.s32 %s33, 1
      %s35 = scalar_select %p32, %s33, %s34
      %p38 = pneg %p32
      %p39 = scmp.eq.s32.totalorder %s23, 1
      %p40 = por %p38, %p39
      %p41 = scmp.ne.s32.totalorder %s33, %s36
      %p42 = scmp.eq.s32.totalorder %s23, 0
      %p43 = por %p41, %p42
      %p44 = scmp.ne.s32.totalorder %s33, %s36
      %p45 = scmp.eq.s32.totalorder %s28, 1
      %p46 = por %p44, %p45
      %p47 = scmp.ne.s32.totalorder %s36, %s37
      %p48 = scmp.eq.s32.totalorder %s28, 0
      %p49 = por %p47, %p48
      %p50 = scmp.ne.s32.totalorder %s36, %s37
      %p51 = scmp.eq.s32.totalorder %s29, 1
      %p52 = por %p50, %p51
      %p54 = scmp.ne.s32.totalorder %s37, %s53
      %p55 = scmp.eq.s32.totalorder %s29, 0
      %p56 = por %p54, %p55
      %s58 = sadd.s32 %s57, 1
      %p61 = scmp.eq.s32.totalorder %s23, 1
      %p62 = scmp.ne.s32.totalorder %s57, %s59
      %p63 = scmp.eq.s32.totalorder %s23, 0
      %p64 = por %p62, %p63
      %p65 = scmp.ne.s32.totalorder %s57, %s59
      %p66 = scmp.eq.s32.totalorder %s28, 1
      %p67 = por %p65, %p66
      %p68 = scmp.ne.s32.totalorder %s59, %s60
      %p69 = scmp.eq.s32.totalorder %s28, 0
      %p70 = por %p68, %p69
      %p71 = scmp.ne.s32.totalorder %s59, %s60
      %p72 = scmp.eq.s32.totalorder %s29, 1
      %p73 = por %p71, %p72
      %p75 = scmp.ne.s32.totalorder %s60, %s74
      %p76 = scmp.eq.s32.totalorder %s29, 0
      %p77 = por %p75, %p76
      %s79 = sadd.s32 %s78, 1
      %p82 = scmp.eq.s32.totalorder %s23, 1
      %p83 = scmp.ne.s32.totalorder %s78, %s80
      %p84 = scmp.eq.s32.totalorder %s23, 0
      %p85 = por %p83, %p84
      %p86 = scmp.ne.s32.totalorder %s78, %s80
      %p87 = scmp.eq.s32.totalorder %s28, 1
      %p88 = por %p86, %p87
      %p89 = scmp.ne.s32.totalorder %s80, %s81
      %p90 = scmp.eq.s32.totalorder %s28, 0
      %p91 = por %p89, %p90
      %p92 = scmp.ne.s32.totalorder %s80, %s81
      %p93 = scmp.eq.s32.totalorder %s29, 1
      %p94 = por %p92, %p93
      %p96 = scmp.ne.s32.totalorder %s81, %s95
      %p97 = scmp.eq.s32.totalorder %s29, 0
      %p98 = por %p96, %p97
      %s100 = sadd.s32 %s99, 1
      %p103 = scmp.eq.s32.totalorder %s23, 1
      %p104 = scmp.ne.s32.totalorder %s99, %s101
      %p105 = scmp.eq.s32.totalorder %s23, 0
      %p106 = por %p104, %p105
      %p107 = scmp.ne.s32.totalorder %s99, %s101
      %p108 = scmp.eq.s32.totalorder %s28, 1
      %p109 = por %p107, %p108
      %p110 = scmp.ne.s32.totalorder %s101, %s102
      %p111 = scmp.eq.s32.totalorder %s28, 0
      %p112 = por %p110, %p111
      %p113 = scmp.ne.s32.totalorder %s101, %s102
      %p114 = scmp.eq.s32.totalorder %s29, 1
      %p115 = por %p113, %p114
      %p117 = scmp.ne.s32.totalorder %s102, %s116
      %p118 = scmp.eq.s32.totalorder %s29, 0
      %p119 = por %p117, %p118
      %s121 = sadd.s32 %s120, 1
      %p124 = scmp.eq.s32.totalorder %s23, 1
      %p125 = scmp.ne.s32.totalorder %s120, %s122
      %p126 = scmp.eq.s32.totalorder %s23, 0
      %p127 = por %p125, %p126
      %p128 = scmp.ne.s32.totalorder %s120, %s122
      %p129 = scmp.eq.s32.totalorder %s28, 1
      %p130 = por %p128, %p129
      %p131 = scmp.ne.s32.totalorder %s122, %s123
      %p132 = scmp.eq.s32.totalorder %s28, 0
      %p133 = por %p131, %p132
      %p134 = scmp.ne.s32.totalorder %s122, %s123
      %p135 = scmp.eq.s32.totalorder %s29, 1
      %p136 = por %p134, %p135
      %p138 = scmp.ne.s32.totalorder %s123, %s137
      %p139 = scmp.eq.s32.totalorder %s29, 0
      %p140 = por %p138, %p139
      %s142 = sadd.s32 %s141, 1
      %p145 = scmp.eq.s32.totalorder %s23, 1
      %p146 = scmp.ne.s32.totalorder %s141, %s143
      %p147 = scmp.eq.s32.totalorder %s23, 0
      %p148 = por %p146, %p147
      %p149 = scmp.ne.s32.totalorder %s141, %s143
      %p150 = scmp.eq.s32.totalorder %s28, 1
      %p151 = por %p149, %p150
      %p152 = scmp.ne.s32.totalorder %s143, %s144
      %p153 = scmp.eq.s32.totalorder %s28, 0
      %p154 = por %p152, %p153
      %p155 = scmp.ne.s32.totalorder %s143, %s144
      %p156 = scmp.eq.s32.totalorder %s29, 1
      %p157 = por %p155, %p156
      %p159 = scmp.ne.s32.totalorder %s144, %s158
      %p160 = scmp.eq.s32.totalorder %s29, 0
      %p161 = por %p159, %p160
      %s163 = sadd.s32 %s162, 1
      %p166 = scmp.eq.s32.totalorder %s23, 1
      %p167 = scmp.ne.s32.totalorder %s162, %s164
      %p168 = scmp.eq.s32.totalorder %s23, 0
      %p169 = por %p167, %p168
      %p170 = scmp.ne.s32.totalorder %s162, %s164
      %p171 = scmp.eq.s32.totalorder %s28, 1
      %p172 = por %p170, %p171
      %p173 = scmp.ne.s32.totalorder %s164, %s165
      %p174 = scmp.eq.s32.totalorder %s28, 0
      %p175 = por %p173, %p174
      %p176 = scmp.ne.s32.totalorder %s164, %s165
      %p177 = scmp.eq.s32.totalorder %s29, 1
      %p178 = por %p176, %p177
      %p180 = scmp.ne.s32.totalorder %s165, %s179
      %p181 = scmp.eq.s32.totalorder %s29, 0
      %p182 = por %p180, %p181
      %s184 = sadd.s32 %s183, 1
      %p187 = scmp.eq.s32.totalorder %s23, 1
      %p188 = scmp.ne.s32.totalorder %s183, %s185
      %p189 = scmp.eq.s32.totalorder %s23, 0
      %p190 = por %p188, %p189
      %p191 = scmp.ne.s32.totalorder %s183, %s185
      %p192 = scmp.eq.s32.totalorder %s28, 1
      %p193 = por %p191, %p192
      %p194 = scmp.ne.s32.totalorder %s185, %s186
      %p195 = scmp.eq.s32.totalorder %s28, 0
      %p196 = por %p194, %p195
      %p197 = scmp.ne.s32.totalorder %s185, %s186
      %p198 = scmp.eq.s32.totalorder %s29, 1
      %p199 = por %p197, %p198
      %p201 = scmp.ne.s32.totalorder %s186, %s200
      %p202 = scmp.eq.s32.totalorder %s29, 0
      %p203 = por %p201, %p202
      %s205 = sadd.s32 %s204, 1
      %p208 = scmp.eq.s32.totalorder %s23, 1
      %p209 = scmp.ne.s32.totalorder %s204, %s206
      %p210 = scmp.eq.s32.totalorder %s23, 0
      %p211 = por %p209, %p210
      %p212 = scmp.ne.s32.totalorder %s204, %s206
      %p213 = scmp.eq.s32.totalorder %s28, 1
      %p214 = por %p212, %p213
      %p215 = scmp.ne.s32.totalorder %s206, %s207
      %p216 = scmp.eq.s32.totalorder %s28, 0
      %p217 = por %p215, %p216
      %p218 = scmp.ne.s32.totalorder %s206, %s207
      %p219 = scmp.eq.s32.totalorder %s29, 1
      %p220 = por %p218, %p219
      %p222 = scmp.ne.s32.totalorder %s207, %s221
      %p223 = scmp.eq.s32.totalorder %s29, 0
      %p224 = por %p222, %p223
      %s225 = ssub.s32 %s23, %s30
      %p226 = scmp.eq.s32.totalorder %s225, 0
      %s228 = sadd.s32 %s227, 1
      %s229 = scalar_select %p226, %s227, %s228
      %p232 = pneg %p226
      %p233 = scmp.eq.s32.totalorder %s23, 1
      %p234 = por %p232, %p233
      %p235 = scmp.ne.s32.totalorder %s227, %s230
      %p236 = scmp.eq.s32.totalorder %s23, 0
      %p237 = por %p235, %p236
      %p238 = scmp.ne.s32.totalorder %s227, %s230
      %p239 = scmp.eq.s32.totalorder %s28, 1
      %p240 = por %p238, %p239
      %p241 = scmp.ne.s32.totalorder %s230, %s231
      %p242 = scmp.eq.s32.totalorder %s28, 0
      %p243 = por %p241, %p242
      %p244 = scmp.ne.s32.totalorder %s230, %s231
      %p245 = scmp.eq.s32.totalorder %s29, 1
      %p246 = por %p244, %p245
      %p248 = scmp.ne.s32.totalorder %s231, %s247
      %p249 = scmp.eq.s32.totalorder %s29, 0
      %p250 = por %p248, %p249
      %p251 = scmp.le.s32.totalorder 1, %s23
      %p252 = scmp.lt.s32.totalorder %s23, 3
      %p253 = pnand %p251, %p252
      %p254 = pneg %p253
      // Predicated region
      $region9: #{tpu_custom_call.1} parent=5 // pred_check
        _
      $region10: #{tpu_custom_call.1} parent=5 // pred_check_branch
        %256 = sbr.rel (%p253) target = $region12
      $region11: #{tpu_custom_call.1} parent=5 // pred_region
        %s257 = ssub.s32 %s23, 1
        // Predicated region
        $region13: #{tpu_custom_call.1} parent=11 // pred_check
          %p258 = pneg %p70
        $region14: #{tpu_custom_call.1} parent=11 // pred_check_branch
          %260 = sbr.rel (%p258) target = $region16
        $region15: #{tpu_custom_call.1} parent=11 // pred_region
          %s262 = ssub.s32 1024, 1024
          %263 = vsyncadd [#allocation6], %s262
          %s264 = sshll.u32 [#allocation5], 4
          %s265 = int_to_ptr.vmem [resolvable:$true] %s264
          %270 = dma.hbm_to_vmem [thread:$0]  %s1, 1024, %s265, [#allocation6], 64, 64, 4
        $region16: #{tpu_custom_call.1} parent=11 // pred_fallthru
          _
        // Predicated region
        $region17: #{tpu_custom_call.1} parent=11 // pred_check
          %p271 = pneg %p91
        $region18: #{tpu_custom_call.1} parent=11 // pred_check_branch
          %273 = sbr.rel (%p271) target = $region20
        $region19: #{tpu_custom_call.1} parent=11 // pred_region
          _
        $region20: #{tpu_custom_call.1} parent=11 // pred_fallthru
          _
        // Predicated region
        $region21: #{tpu_custom_call.1} parent=11 // pred_check
          %p274 = pneg %p112
        $region22: #{tpu_custom_call.1} parent=11 // pred_check_branch
          %276 = sbr.rel (%p274) target = $region24
        $region23: #{tpu_custom_call.1} parent=11 // pred_region
          %s278 = ssub.s32 1024, 1024
          %279 = vsyncadd [#allocation6], %s278
          %s280 = sshll.u32 [#allocation7], 4
          %s281 = int_to_ptr.vmem [resolvable:$true] %s280
          %286 = dma.hbm_to_vmem [thread:$0]  %s3, 1024, %s281, [#allocation6], 64, 64, 4
        $region24: #{tpu_custom_call.1} parent=11 // pred_fallthru
          _
        // Predicated region
        $region25: #{tpu_custom_call.1} parent=11 // pred_check
          %p287 = pneg %p133
        $region26: #{tpu_custom_call.1} parent=11 // pred_check_branch
          %289 = sbr.rel (%p287) target = $region28
        $region27: #{tpu_custom_call.1} parent=11 // pred_region
          _
        $region28: #{tpu_custom_call.1} parent=11 // pred_fallthru
          _
        // Predicated region
        $region29: #{tpu_custom_call.1} parent=11 // pred_check
          %p290 = pneg %p154
        $region30: #{tpu_custom_call.1} parent=11 // pred_check_branch
          %292 = sbr.rel (%p290) target = $region32
        $region31: #{tpu_custom_call.1} parent=11 // pred_region
          %s294 = ssub.s32 1024, 1024
          %295 = vsyncadd [#allocation9], %s294
          %s296 = sshll.u32 [#allocation8], 4
          %s297 = int_to_ptr.vmem [resolvable:$true] %s296
          %302 = dma.hbm_to_vmem [thread:$0]  %s5, 1024, %s297, [#allocation9], 64, 64, 4
        $region32: #{tpu_custom_call.1} parent=11 // pred_fallthru
          _
        // Predicated region
        $region33: #{tpu_custom_call.1} parent=11 // pred_check
          %p303 = pneg %p175
        $region34: #{tpu_custom_call.1} parent=11 // pred_check_branch
          %305 = sbr.rel (%p303) target = $region36
        $region35: #{tpu_custom_call.1} parent=11 // pred_region
          _
        $region36: #{tpu_custom_call.1} parent=11 // pred_fallthru
          _
        // Predicated region
        $region37: #{tpu_custom_call.1} parent=11 // pred_check
          %p306 = pneg %p196
        $region38: #{tpu_custom_call.1} parent=11 // pred_check_branch
          %308 = sbr.rel (%p306) target = $region40
        $region39: #{tpu_custom_call.1} parent=11 // pred_region
          %s310 = ssub.s32 1024, 1024
          %311 = vsyncadd [#allocation9], %s310
          %s312 = sshll.u32 [#allocation10], 4
          %s313 = int_to_ptr.vmem [resolvable:$true] %s312
          %318 = dma.hbm_to_vmem [thread:$0]  %s7, 1024, %s313, [#allocation9], 64, 64, 4
        $region40: #{tpu_custom_call.1} parent=11 // pred_fallthru
          _
        // Predicated region
        $region41: #{tpu_custom_call.1} parent=11 // pred_check
          %p319 = pneg %p217
        $region42: #{tpu_custom_call.1} parent=11 // pred_check_branch
          %321 = sbr.rel (%p319) target = $region44
        $region43: #{tpu_custom_call.1} parent=11 // pred_region
          _
        $region44: #{tpu_custom_call.1} parent=11 // pred_fallthru
          _
      $region12: #{tpu_custom_call.1} parent=5 // pred_fallthru
        _
      %p322 = scmp.lt.s32.totalorder %s23, 2
      // Predicated region
      $region45: #{tpu_custom_call.1} parent=5 // pred_check
        %p323 = pneg %p322
      $region46: #{tpu_custom_call.1} parent=5 // pred_check_branch
        %325 = sbr.rel (%p323) target = $region48
      $region47: #{tpu_custom_call.1} parent=5 // pred_region
        // Predicated region
        $region49: #{tpu_custom_call.1} parent=47 // pred_check
          %p326 = pneg %p43
        $region50: #{tpu_custom_call.1} parent=47 // pred_check_branch
          %328 = sbr.rel (%p326) target = $region52
        $region51: #{tpu_custom_call.1} parent=47 // pred_region
          %s329 = sand.u32 %s33, 1
          %s330 = scalar_lea.sflag [#allocation3], %s329
          %s331 = sand.u32 %s33, 1
          %s332 = smul.addr %s331, 128
          %s333 = scalar_lea.vmem [#allocation2], %s332
          %s334 = smul.u32 16, %s23
          %s336 = ssub.s32 2048, 2048
          %337 = vsyncadd %s330, %s336
          %s338 = smul.addr %s334, 128
          %s339 = scalar_lea.hbm %s0, %s338
          %s340 = sshll.u32 %s333, 4
          %s341 = int_to_ptr.vmem [resolvable:$true] %s340
          %346 = dma.hbm_to_vmem [thread:$0]  %s339, 2048, %s341, %s330, 128, 128, 8
        $region52: #{tpu_custom_call.1} parent=47 // pred_fallthru
          _
      $region48: #{tpu_custom_call.1} parent=5 // pred_fallthru
        _
      %p347 = scmp.le.s32.totalorder 1, %s23
      %p348 = scmp.lt.s32.totalorder %s23, 3
      %p349 = pnand %p347, %p348
      %p350 = pneg %p349
      // Predicated region
      $region53: #{tpu_custom_call.1} parent=5 // pred_check
        _
      $region54: #{tpu_custom_call.1} parent=5 // pred_check_branch
        %352 = sbr.rel (%p349) target = $region56
      $region55: #{tpu_custom_call.1} parent=5 // pred_region
        %s353 = ssub.s32 %s23, 1
        %s354 = sand.u32 %s36, 1
        %s355 = scalar_lea.sflag [#allocation3], %s354
        %s356 = sand.u32 %s36, 1
        %s357 = smul.addr %s356, 128
        %s358 = scalar_lea.vmem [#allocation2], %s357
        // Predicated region
        $region57: #{tpu_custom_call.1} parent=55 // pred_check
          %p359 = pneg %p49
        $region58: #{tpu_custom_call.1} parent=55 // pred_check_branch
          %361 = sbr.rel (%p359) target = $region60
        $region59: #{tpu_custom_call.1} parent=55 // pred_region
          %362 = dma.done %s355, 2048
        $region60: #{tpu_custom_call.1} parent=55 // pred_fallthru
          _
        // Predicated region
        $region61: #{tpu_custom_call.1} parent=55 // pred_check
          %p363 = pneg %p70
        $region62: #{tpu_custom_call.1} parent=55 // pred_check_branch
          %365 = sbr.rel (%p363) target = $region64
        $region63: #{tpu_custom_call.1} parent=55 // pred_region
          %366 = dma.done [#allocation6], 1024
        $region64: #{tpu_custom_call.1} parent=55 // pred_fallthru
          _
        // Predicated region
        $region65: #{tpu_custom_call.1} parent=55 // pred_check
          %p367 = pneg %p112
        $region66: #{tpu_custom_call.1} parent=55 // pred_check_branch
          %369 = sbr.rel (%p367) target = $region68
        $region67: #{tpu_custom_call.1} parent=55 // pred_region
          %370 = dma.done [#allocation6], 1024
        $region68: #{tpu_custom_call.1} parent=55 // pred_fallthru
          _
        // Predicated region
        $region69: #{tpu_custom_call.1} parent=55 // pred_check
          %p371 = pneg %p154
        $region70: #{tpu_custom_call.1} parent=55 // pred_check_branch
          %373 = sbr.rel (%p371) target = $region72
        $region71: #{tpu_custom_call.1} parent=55 // pred_region
          %374 = dma.done [#allocation9], 1024
        $region72: #{tpu_custom_call.1} parent=55 // pred_fallthru
          _
        // Predicated region
        $region73: #{tpu_custom_call.1} parent=55 // pred_check
          %p375 = pneg %p196
        $region74: #{tpu_custom_call.1} parent=55 // pred_check_branch
          %377 = sbr.rel (%p375) target = $region76
        $region75: #{tpu_custom_call.1} parent=55 // pred_region
          %378 = dma.done [#allocation9], 1024
        $region76: #{tpu_custom_call.1} parent=55 // pred_fallthru
          _
        %s379 = sand.u32 %s36, 1
        %s380 = scalar_lea.sflag [#allocation3], %s379
        %s381 = sand.u32 %s36, 1
        %s382 = smul.addr %s381, 128
        %s383 = scalar_lea.vmem [#allocation2], %s382
        %p384 = pneg %p49
        %p385 = pneg %p46
        %p386 = pneg %p70
        %p387 = pneg %p67
        %p388 = pneg %p91
        %p389 = pneg %p88
        %p390 = pneg %p112
        %p391 = pneg %p109
        %p392 = pneg %p133
        %p393 = pneg %p130
        %p394 = pneg %p154
        %p395 = pneg %p151
        %p396 = pneg %p175
        %p397 = pneg %p172
        %p398 = pneg %p196
        %p399 = pneg %p193
        %p400 = pneg %p217
        %p401 = pneg %p214
        %p402 = pneg %p243
        %p403 = pneg %p240
        %s404 = sand.u32 %s230, 1
        %s405 = scalar_lea.sflag [#allocation4], %s404
        %s406 = sand.u32 %s230, 1
        %s407 = smul.addr %s406, 128
        %s408 = scalar_lea.vmem [#allocation11], %s407
        %s409 = smul.u32 16, %s28
        %s410 = smul.u32 16, %s28
        %v412 = vld [vmem:[%s358] sm:$0xff]
        %v413 = vld [vmem:[%s358 + $0x8] sm:$0xff]
        %v414 = vld [vmem:[%s358 + $0x10] sm:$0xff]
        %v415 = vld [vmem:[%s358 + $0x18] sm:$0xff]
        %v416 = vld [vmem:[%s358 + $0x20] sm:$0xff]
        %v417 = vld [vmem:[%s358 + $0x28] sm:$0xff]
        %v418 = vld [vmem:[%s358 + $0x30] sm:$0xff]
        %v419 = vld [vmem:[%s358 + $0x38] sm:$0xff]
        %v420 = vld [vmem:[%s358 + $0x40] sm:$0xff]
        %v421 = vld [vmem:[%s358 + $0x48] sm:$0xff]
        %v422 = vld [vmem:[%s358 + $0x50] sm:$0xff]
        %v423 = vld [vmem:[%s358 + $0x58] sm:$0xff]
        %v424 = vld [vmem:[%s358 + $0x60] sm:$0xff]
        %v425 = vld [vmem:[%s358 + $0x68] sm:$0xff]
        %v426 = vld [vmem:[%s358 + $0x70] sm:$0xff]
        %v427 = vld [vmem:[%s358 + $0x78] sm:$0xff]
        %v428 = vpack.c.bf16 %v413, %v412
        %v429 = vpack.c.bf16 %v415, %v414
        %v430 = vpack.c.bf16 %v417, %v416
        %v431 = vpack.c.bf16 %v419, %v418
        %v432 = vpack.c.bf16 %v421, %v420
        %v433 = vpack.c.bf16 %v423, %v422
        %v434 = vpack.c.bf16 %v425, %v424
        %v435 = vpack.c.bf16 %v427, %v426
        %v436 = vld [vmem:[#allocation5] sm:$0xf]
        %v437 = vld [vmem:[#allocation5 + $0x4] sm:$0xf]
        %v438 = vld [vmem:[#allocation5 + $0x8] sm:$0xf]
        %v439 = vld [vmem:[#allocation5 + $0xc] sm:$0xf]
        %v440 = vld [vmem:[#allocation5 + $0x10] sm:$0xf]
        %v441 = vld [vmem:[#allocation5 + $0x14] sm:$0xf]
        %v442 = vld [vmem:[#allocation5 + $0x18] sm:$0xf]
        %v443 = vld [vmem:[#allocation5 + $0x1c] sm:$0xf]
        %v444 = vld [vmem:[#allocation5 + $0x20] sm:$0xf]
        %v445 = vld [vmem:[#allocation5 + $0x24] sm:$0xf]
        %v446 = vld [vmem:[#allocation5 + $0x28] sm:$0xf]
        %v447 = vld [vmem:[#allocation5 + $0x2c] sm:$0xf]
        %v448 = vld [vmem:[#allocation5 + $0x30] sm:$0xf]
        %v449 = vld [vmem:[#allocation5 + $0x34] sm:$0xf]
        %v450 = vld [vmem:[#allocation5 + $0x38] sm:$0xf]
        %v451 = vld [vmem:[#allocation5 + $0x3c] sm:$0xf]
        %v452 = vld [vmem:[%s2] sm:$0x1]
        %v454 = vlaneseq
        %v455 = vshrl.u32 %v454, 7
        %v456 = vsub.s32 0, %v455
        %v457 = vrot.slane %v452, %v456
        %v475 = vunpack.c.l.b16 %v436
        %v476 = vunpack.c.l.b16 %v437
        %v477 = vunpack.c.l.b16 %v438
        %v478 = vunpack.c.l.b16 %v439
        %v479 = vunpack.c.l.b16 %v440
        %v480 = vunpack.c.l.b16 %v441
        %v481 = vunpack.c.l.b16 %v442
        %v482 = vunpack.c.l.b16 %v443
        %v483 = vunpack.c.l.b16 %v444
        %v484 = vunpack.c.l.b16 %v445
        %v485 = vunpack.c.l.b16 %v446
        %v486 = vunpack.c.l.b16 %v447
        %v487 = vunpack.c.l.b16 %v448
        %v488 = vunpack.c.l.b16 %v449
        %v489 = vunpack.c.l.b16 %v450
        %v490 = vunpack.c.l.b16 %v451
        %v491 = vpack.c.b16 %v476, %v475
        %v492 = vpack.c.b16 %v478, %v477
        %v493 = vpack.c.b16 %v480, %v479
        %v494 = vpack.c.b16 %v482, %v481
        %v495 = vpack.c.b16 %v484, %v483
        %v496 = vpack.c.b16 %v486, %v485
        %v497 = vpack.c.b16 %v488, %v487
        %v498 = vpack.c.b16 %v490, %v489
        %507 = vmatprep.subr.bf16.mxu0 0
        %508 = vmatpush1.bf16.msra.mxu0 %v498
        %509 = vmatprep.subr.bf16.mxu0 0
        %510 = vmatpush1.bf16.msra.mxu0 %v497
        %511 = vmatprep.subr.bf16.mxu0 0
        %512 = vmatpush1.bf16.msra.mxu0 %v496
        %513 = vmatprep.subr.bf16.mxu0 0
        %514 = vmatpush1.bf16.msra.mxu0 %v495
        %515 = vmatprep.subr.bf16.mxu0 0
        %516 = vmatpush1.bf16.msra.mxu0 %v494
        %517 = vmatprep.subr.bf16.mxu0 0
        %518 = vmatpush1.bf16.msra.mxu0 %v493
        %519 = vmatprep.subr.bf16.mxu0 0
        %520 = vmatpush1.bf16.msra.mxu0 %v492
        %521 = vmatprep.subr.bf16.mxu0 0
        %522 = vmatpush1.bf16.msra.mxu0 %v491
        %523 = vmatprep.subr.bf16.mxu0 0
        %524 = vmatpush2.bf16.msra.mxu0 0
        %525 = vmatprep.subr.bf16.mxu0 0
        %526 = vmatpush2.bf16.msra.mxu0 0
        %527 = vmatprep.subr.bf16.mxu0 0
        %528 = vmatpush2.bf16.msra.mxu0 0
        %529 = vmatprep.subr.bf16.mxu0 0
        %530 = vmatpush2.bf16.msra.mxu0 0
        %531 = vmatprep.subr.bf16.mxu0 0
        %532 = vmatpush2.bf16.msra.mxu0 0
        %533 = vmatprep.subr.bf16.mxu0 0
        %534 = vmatpush2.bf16.msra.mxu0 0
        %535 = vmatprep.subr.bf16.mxu0 0
        %536 = vmatpush2.bf16.msra.mxu0 0
        %537 = vmatprep.subr.bf16.mxu0 0
        %538 = vmatpush2.bf16.msra.mxu0 0
        %539 = vmatprep.mubr.bf16.mxu0 0
        %540 = vmatmul.mubr.bf16.gmra.mxu0 %v428
        %v541 = vpop.f32.mrf.mxu0
        %v542 = vadd.f32 %v457, %v541
        %v543 = vpop.f32.mrf.mxu0
        %v544 = vpop.f32.mrf.mxu0
        %v545 = vadd.f32 %v457, %v544
        %v546 = vpop.f32.mrf.mxu0
        %547 = vmatprep.mubr.bf16.mxu0 0
        %548 = vmatmul.mubr.bf16.gmra.mxu0 %v429
        %v549 = vpop.f32.mrf.mxu0
        %v550 = vadd.f32 %v457, %v549
        %v551 = vpop.f32.mrf.mxu0
        %v552 = vpop.f32.mrf.mxu0
        %v553 = vadd.f32 %v457, %v552
        %v554 = vpop.f32.mrf.mxu0
        %555 = vmatprep.mubr.bf16.mxu0 0
        %556 = vmatmul.mubr.bf16.gmra.mxu0 %v430
        %v557 = vpop.f32.mrf.mxu0
        %v558 = vadd.f32 %v457, %v557
        %v559 = vpop.f32.mrf.mxu0
        %v560 = vpop.f32.mrf.mxu0
        %v561 = vadd.f32 %v457, %v560
        %v562 = vpop.f32.mrf.mxu0
        %563 = vmatprep.mubr.bf16.mxu0 0
        %564 = vmatmul.mubr.bf16.gmra.mxu0 %v431
        %v565 = vpop.f32.mrf.mxu0
        %v566 = vadd.f32 %v457, %v565
        %v567 = vpop.f32.mrf.mxu0
        %v568 = vpop.f32.mrf.mxu0
        %v569 = vadd.f32 %v457, %v568
        %v570 = vpop.f32.mrf.mxu0
        %571 = vmatprep.mubr.bf16.mxu0 0
        %572 = vmatmul.mubr.bf16.gmra.mxu0 %v432
        %v573 = vpop.f32.mrf.mxu0
        %v574 = vadd.f32 %v457, %v573
        %v575 = vpop.f32.mrf.mxu0
        %v576 = vpop.f32.mrf.mxu0
        %v577 = vadd.f32 %v457, %v576
        %v578 = vpop.f32.mrf.mxu0
        %579 = vmatprep.mubr.bf16.mxu0 0
        %580 = vmatmul.mubr.bf16.gmra.mxu0 %v433
        %v581 = vpop.f32.mrf.mxu0
        %v582 = vadd.f32 %v457, %v581
        %v583 = vpop.f32.mrf.mxu0
        %v584 = vpop.f32.mrf.mxu0
        %v585 = vadd.f32 %v457, %v584
        %v586 = vpop.f32.mrf.mxu0
        %587 = vmatprep.mubr.bf16.mxu0 0
        %588 = vmatmul.mubr.bf16.gmra.mxu0 %v434
        %v589 = vpop.f32.mrf.mxu0
        %v590 = vadd.f32 %v457, %v589
        %v591 = vpop.f32.mrf.mxu0
        %v592 = vpop.f32.mrf.mxu0
        %v593 = vadd.f32 %v457, %v592
        %v594 = vpop.f32.mrf.mxu0
        %595 = vmatprep.mubr.bf16.mxu0 0
        %596 = vmatmul.mubr.bf16.gmra.mxu0 %v435
        %v597 = vpop.f32.mrf.mxu0
        %v598 = vadd.f32 %v457, %v597
        %v599 = vpop.f32.mrf.mxu0
        %v600 = vpop.f32.mrf.mxu0
        %v601 = vadd.f32 %v457, %v600
        %v602 = vpop.f32.mrf.mxu0
        %603 = vdwg.mxu0
        %v604 = vmul.f32 %v542, 0.5
        %v605 = vmul.f32 %v545, 0.5
        %v606 = vmul.f32 %v550, 0.5
        %v607 = vmul.f32 %v553, 0.5
        %v608 = vmul.f32 %v558, 0.5
        %v609 = vmul.f32 %v561, 0.5
        %v610 = vmul.f32 %v566, 0.5
        %v611 = vmul.f32 %v569, 0.5
        %v612 = vmul.f32 %v574, 0.5
        %v613 = vmul.f32 %v577, 0.5
        %v614 = vmul.f32 %v582, 0.5
        %v615 = vmul.f32 %v585, 0.5
        %v616 = vmul.f32 %v590, 0.5
        %v617 = vmul.f32 %v593, 0.5
        %v618 = vmul.f32 %v598, 0.5
        %v619 = vmul.f32 %v601, 0.5
        %v620 = vtanh.pop %v604
        %v621 = vtanh.pop %v605
        %v622 = vtanh.pop %v606
        %v623 = vtanh.pop %v607
        %v624 = vtanh.pop %v608
        %v625 = vtanh.pop %v609
        %v626 = vtanh.pop %v610
        %v627 = vtanh.pop %v611
        %v628 = vtanh.pop %v612
        %v629 = vtanh.pop %v613
        %v630 = vtanh.pop %v614
        %v631 = vtanh.pop %v615
        %v632 = vtanh.pop %v616
        %v633 = vtanh.pop %v617
        %v634 = vtanh.pop %v618
        %v635 = vtanh.pop %v619
        %v636 = vmul.f32 %v620, 0.5
        %v637 = vmul.f32 %v621, 0.5
        %v638 = vmul.f32 %v622, 0.5
        %v639 = vmul.f32 %v623, 0.5
        %v640 = vmul.f32 %v624, 0.5
        %v641 = vmul.f32 %v625, 0.5
        %v642 = vmul.f32 %v626, 0.5
        %v643 = vmul.f32 %v627, 0.5
        %v644 = vmul.f32 %v628, 0.5
        %v645 = vmul.f32 %v629, 0.5
        %v646 = vmul.f32 %v630, 0.5
        %v647 = vmul.f32 %v631, 0.5
        %v648 = vmul.f32 %v632, 0.5
        %v649 = vmul.f32 %v633, 0.5
        %v650 = vmul.f32 %v634, 0.5
        %v651 = vmul.f32 %v635, 0.5
        %v652 = vadd.f32 %v636, 0.5
        %v653 = vadd.f32 %v637, 0.5
        %v654 = vadd.f32 %v638, 0.5
        %v655 = vadd.f32 %v639, 0.5
        %v656 = vadd.f32 %v640, 0.5
        %v657 = vadd.f32 %v641, 0.5
        %v658 = vadd.f32 %v642, 0.5
        %v659 = vadd.f32 %v643, 0.5
        %v660 = vadd.f32 %v644, 0.5
        %v661 = vadd.f32 %v645, 0.5
        %v662 = vadd.f32 %v646, 0.5
        %v663 = vadd.f32 %v647, 0.5
        %v664 = vadd.f32 %v648, 0.5
        %v665 = vadd.f32 %v649, 0.5
        %v666 = vadd.f32 %v650, 0.5
        %v667 = vadd.f32 %v651, 0.5
        %v668 = vpack.c.bf16 %v653, %v652
        %v669 = vpack.c.bf16 %v655, %v654
        %v670 = vpack.c.bf16 %v657, %v656
        %v671 = vpack.c.bf16 %v659, %v658
        %v672 = vpack.c.bf16 %v661, %v660
        %v673 = vpack.c.bf16 %v663, %v662
        %v674 = vpack.c.bf16 %v665, %v664
        %v675 = vpack.c.bf16 %v667, %v666
        %v676 = vld [vmem:[#allocation7] sm:$0xf]
        %v677 = vld [vmem:[#allocation7 + $0x4] sm:$0xf]
        %v678 = vld [vmem:[#allocation7 + $0x8] sm:$0xf]
        %v679 = vld [vmem:[#allocation7 + $0xc] sm:$0xf]
        %v680 = vld [vmem:[#allocation7 + $0x10] sm:$0xf]
        %v681 = vld [vmem:[#allocation7 + $0x14] sm:$0xf]
        %v682 = vld [vmem:[#allocation7 + $0x18] sm:$0xf]
        %v683 = vld [vmem:[#allocation7 + $0x1c] sm:$0xf]
        %v684 = vld [vmem:[#allocation7 + $0x20] sm:$0xf]
        %v685 = vld [vmem:[#allocation7 + $0x24] sm:$0xf]
        %v686 = vld [vmem:[#allocation7 + $0x28] sm:$0xf]
        %v687 = vld [vmem:[#allocation7 + $0x2c] sm:$0xf]
        %v688 = vld [vmem:[#allocation7 + $0x30] sm:$0xf]
        %v689 = vld [vmem:[#allocation7 + $0x34] sm:$0xf]
        %v690 = vld [vmem:[#allocation7 + $0x38] sm:$0xf]
        %v691 = vld [vmem:[#allocation7 + $0x3c] sm:$0xf]
        %v692 = vld [vmem:[%s4] sm:$0x1]
        %v694 = vlaneseq
        %v695 = vshrl.u32 %v694, 7
        %v696 = vsub.s32 0, %v695
        %v697 = vrot.slane %v692, %v696
        %v715 = vunpack.c.l.b16 %v676
        %v716 = vunpack.c.l.b16 %v677
        %v717 = vunpack.c.l.b16 %v678
        %v718 = vunpack.c.l.b16 %v679
        %v719 = vunpack.c.l.b16 %v680
        %v720 = vunpack.c.l.b16 %v681
        %v721 = vunpack.c.l.b16 %v682
        %v722 = vunpack.c.l.b16 %v683
        %v723 = vunpack.c.l.b16 %v684
        %v724 = vunpack.c.l.b16 %v685
        %v725 = vunpack.c.l.b16 %v686
        %v726 = vunpack.c.l.b16 %v687
        %v727 = vunpack.c.l.b16 %v688
        %v728 = vunpack.c.l.b16 %v689
        %v729 = vunpack.c.l.b16 %v690
        %v730 = vunpack.c.l.b16 %v691
        %v731 = vpack.c.b16 %v716, %v715
        %v732 = vpack.c.b16 %v718, %v717
        %v733 = vpack.c.b16 %v720, %v719
        %v734 = vpack.c.b16 %v722, %v721
        %v735 = vpack.c.b16 %v724, %v723
        %v736 = vpack.c.b16 %v726, %v725
        %v737 = vpack.c.b16 %v728, %v727
        %v738 = vpack.c.b16 %v730, %v729
        %747 = vmatprep.subr.bf16.mxu0 0
        %748 = vmatpush1.bf16.msra.mxu0 %v738
        %749 = vmatprep.subr.bf16.mxu0 0
        %750 = vmatpush1.bf16.msra.mxu0 %v737
        %751 = vmatprep.subr.bf16.mxu0 0
        %752 = vmatpush1.bf16.msra.mxu0 %v736
        %753 = vmatprep.subr.bf16.mxu0 0
        %754 = vmatpush1.bf16.msra.mxu0 %v735
        %755 = vmatprep.subr.bf16.mxu0 0
        %756 = vmatpush1.bf16.msra.mxu0 %v734
        %757 = vmatprep.subr.bf16.mxu0 0
        %758 = vmatpush1.bf16.msra.mxu0 %v733
        %759 = vmatprep.subr.bf16.mxu0 0
        %760 = vmatpush1.bf16.msra.mxu0 %v732
        %761 = vmatprep.subr.bf16.mxu0 0
        %762 = vmatpush1.bf16.msra.mxu0 %v731
        %763 = vmatprep.subr.bf16.mxu0 0
        %764 = vmatpush2.bf16.msra.mxu0 0
        %765 = vmatprep.subr.bf16.mxu0 0
        %766 = vmatpush2.bf16.msra.mxu0 0
        %767 = vmatprep.subr.bf16.mxu0 0
        %768 = vmatpush2.bf16.msra.mxu0 0
        %769 = vmatprep.subr.bf16.mxu0 0
        %770 = vmatpush2.bf16.msra.mxu0 0
        %771 = vmatprep.subr.bf16.mxu0 0
        %772 = vmatpush2.bf16.msra.mxu0 0
        %773 = vmatprep.subr.bf16.mxu0 0
        %774 = vmatpush2.bf16.msra.mxu0 0
        %775 = vmatprep.subr.bf16.mxu0 0
        %776 = vmatpush2.bf16.msra.mxu0 0
        %777 = vmatprep.subr.bf16.mxu0 0
        %778 = vmatpush2.bf16.msra.mxu0 0
        %779 = vmatprep.mubr.bf16.mxu0 0
        %780 = vmatmul.mubr.bf16.gmra.mxu0 %v668
        %v781 = vpop.f32.mrf.mxu0
        %v782 = vadd.f32 %v697, %v781
        %v783 = vpop.f32.mrf.mxu0
        %v784 = vpop.f32.mrf.mxu0
        %v785 = vadd.f32 %v697, %v784
        %v786 = vpop.f32.mrf.mxu0
        %787 = vmatprep.mubr.bf16.mxu0 0
        %788 = vmatmul.mubr.bf16.gmra.mxu0 %v669
        %v789 = vpop.f32.mrf.mxu0
        %v790 = vadd.f32 %v697, %v789
        %v791 = vpop.f32.mrf.mxu0
        %v792 = vpop.f32.mrf.mxu0
        %v793 = vadd.f32 %v697, %v792
        %v794 = vpop.f32.mrf.mxu0
        %795 = vmatprep.mubr.bf16.mxu0 0
        %796 = vmatmul.mubr.bf16.gmra.mxu0 %v670
        %v797 = vpop.f32.mrf.mxu0
        %v798 = vadd.f32 %v697, %v797
        %v799 = vpop.f32.mrf.mxu0
        %v800 = vpop.f32.mrf.mxu0
        %v801 = vadd.f32 %v697, %v800
        %v802 = vpop.f32.mrf.mxu0
        %803 = vmatprep.mubr.bf16.mxu0 0
        %804 = vmatmul.mubr.bf16.gmra.mxu0 %v671
        %v805 = vpop.f32.mrf.mxu0
        %v806 = vadd.f32 %v697, %v805
        %v807 = vpop.f32.mrf.mxu0
        %v808 = vpop.f32.mrf.mxu0
        %v809 = vadd.f32 %v697, %v808
        %v810 = vpop.f32.mrf.mxu0
        %811 = vmatprep.mubr.bf16.mxu0 0
        %812 = vmatmul.mubr.bf16.gmra.mxu0 %v672
        %v813 = vpop.f32.mrf.mxu0
        %v814 = vadd.f32 %v697, %v813
        %v815 = vpop.f32.mrf.mxu0
        %v816 = vpop.f32.mrf.mxu0
        %v817 = vadd.f32 %v697, %v816
        %v818 = vpop.f32.mrf.mxu0
        %819 = vmatprep.mubr.bf16.mxu0 0
        %820 = vmatmul.mubr.bf16.gmra.mxu0 %v673
        %v821 = vpop.f32.mrf.mxu0
        %v822 = vadd.f32 %v697, %v821
        %v823 = vpop.f32.mrf.mxu0
        %v824 = vpop.f32.mrf.mxu0
        %v825 = vadd.f32 %v697, %v824
        %v826 = vpop.f32.mrf.mxu0
        %827 = vmatprep.mubr.bf16.mxu0 0
        %828 = vmatmul.mubr.bf16.gmra.mxu0 %v674
        %v829 = vpop.f32.mrf.mxu0
        %v830 = vadd.f32 %v697, %v829
        %v831 = vpop.f32.mrf.mxu0
        %v832 = vpop.f32.mrf.mxu0
        %v833 = vadd.f32 %v697, %v832
        %v834 = vpop.f32.mrf.mxu0
        %835 = vmatprep.mubr.bf16.mxu0 0
        %836 = vmatmul.mubr.bf16.gmra.mxu0 %v675
        %v837 = vpop.f32.mrf.mxu0
        %v838 = vadd.f32 %v697, %v837
        %v839 = vpop.f32.mrf.mxu0
        %v840 = vpop.f32.mrf.mxu0
        %v841 = vadd.f32 %v697, %v840
        %v842 = vpop.f32.mrf.mxu0
        %843 = vdwg.mxu0
        %v844 = vmul.f32 %v782, 0.5
        %v845 = vmul.f32 %v785, 0.5
        %v846 = vmul.f32 %v790, 0.5
        %v847 = vmul.f32 %v793, 0.5
        %v848 = vmul.f32 %v798, 0.5
        %v849 = vmul.f32 %v801, 0.5
        %v850 = vmul.f32 %v806, 0.5
        %v851 = vmul.f32 %v809, 0.5
        %v852 = vmul.f32 %v814, 0.5
        %v853 = vmul.f32 %v817, 0.5
        %v854 = vmul.f32 %v822, 0.5
        %v855 = vmul.f32 %v825, 0.5
        %v856 = vmul.f32 %v830, 0.5
        %v857 = vmul.f32 %v833, 0.5
        %v858 = vmul.f32 %v838, 0.5
        %v859 = vmul.f32 %v841, 0.5
        %v860 = vtanh.pop %v844
        %v861 = vtanh.pop %v845
        %v862 = vtanh.pop %v846
        %v863 = vtanh.pop %v847
        %v864 = vtanh.pop %v848
        %v865 = vtanh.pop %v849
        %v866 = vtanh.pop %v850
        %v867 = vtanh.pop %v851
        %v868 = vtanh.pop %v852
        %v869 = vtanh.pop %v853
        %v870 = vtanh.pop %v854
        %v871 = vtanh.pop %v855
        %v872 = vtanh.pop %v856
        %v873 = vtanh.pop %v857
        %v874 = vtanh.pop %v858
        %v875 = vtanh.pop %v859
        %v876 = vmul.f32 %v860, 0.5
        %v877 = vmul.f32 %v861, 0.5
        %v878 = vmul.f32 %v862, 0.5
        %v879 = vmul.f32 %v863, 0.5
        %v880 = vmul.f32 %v864, 0.5
        %v881 = vmul.f32 %v865, 0.5
        %v882 = vmul.f32 %v866, 0.5
        %v883 = vmul.f32 %v867, 0.5
        %v884 = vmul.f32 %v868, 0.5
        %v885 = vmul.f32 %v869, 0.5
        %v886 = vmul.f32 %v870, 0.5
        %v887 = vmul.f32 %v871, 0.5
        %v888 = vmul.f32 %v872, 0.5
        %v889 = vmul.f32 %v873, 0.5
        %v890 = vmul.f32 %v874, 0.5
        %v891 = vmul.f32 %v875, 0.5
        %v892 = vadd.f32 %v876, 0.5
        %v893 = vadd.f32 %v877, 0.5
        %v894 = vadd.f32 %v878, 0.5
        %v895 = vadd.f32 %v879, 0.5
        %v896 = vadd.f32 %v880, 0.5
        %v897 = vadd.f32 %v881, 0.5
        %v898 = vadd.f32 %v882, 0.5
        %v899 = vadd.f32 %v883, 0.5
        %v900 = vadd.f32 %v884, 0.5
        %v901 = vadd.f32 %v885, 0.5
        %v902 = vadd.f32 %v886, 0.5
        %v903 = vadd.f32 %v887, 0.5
        %v904 = vadd.f32 %v888, 0.5
        %v905 = vadd.f32 %v889, 0.5
        %v906 = vadd.f32 %v890, 0.5
        %v907 = vadd.f32 %v891, 0.5
        %v908 = vpack.c.bf16 %v893, %v892
        %v909 = vpack.c.bf16 %v895, %v894
        %v910 = vpack.c.bf16 %v897, %v896
        %v911 = vpack.c.bf16 %v899, %v898
        %v912 = vpack.c.bf16 %v901, %v900
        %v913 = vpack.c.bf16 %v903, %v902
        %v914 = vpack.c.bf16 %v905, %v904
        %v915 = vpack.c.bf16 %v907, %v906
        %v916 = vld [vmem:[#allocation8] sm:$0xf]
        %v917 = vld [vmem:[#allocation8 + $0x4] sm:$0xf]
        %v918 = vld [vmem:[#allocation8 + $0x8] sm:$0xf]
        %v919 = vld [vmem:[#allocation8 + $0xc] sm:$0xf]
        %v920 = vld [vmem:[#allocation8 + $0x10] sm:$0xf]
        %v921 = vld [vmem:[#allocation8 + $0x14] sm:$0xf]
        %v922 = vld [vmem:[#allocation8 + $0x18] sm:$0xf]
        %v923 = vld [vmem:[#allocation8 + $0x1c] sm:$0xf]
        %v924 = vld [vmem:[#allocation8 + $0x20] sm:$0xf]
        %v925 = vld [vmem:[#allocation8 + $0x24] sm:$0xf]
        %v926 = vld [vmem:[#allocation8 + $0x28] sm:$0xf]
        %v927 = vld [vmem:[#allocation8 + $0x2c] sm:$0xf]
        %v928 = vld [vmem:[#allocation8 + $0x30] sm:$0xf]
        %v929 = vld [vmem:[#allocation8 + $0x34] sm:$0xf]
        %v930 = vld [vmem:[#allocation8 + $0x38] sm:$0xf]
        %v931 = vld [vmem:[#allocation8 + $0x3c] sm:$0xf]
        %v932 = vld [vmem:[%s6] sm:$0x1]
        %v934 = vlaneseq
        %v935 = vshrl.u32 %v934, 7
        %v936 = vsub.s32 0, %v935
        %v937 = vrot.slane %v932, %v936
        %v955 = vunpack.c.l.b16 %v916
        %v956 = vunpack.c.l.b16 %v917
        %v957 = vunpack.c.l.b16 %v918
        %v958 = vunpack.c.l.b16 %v919
        %v959 = vunpack.c.l.b16 %v920
        %v960 = vunpack.c.l.b16 %v921
        %v961 = vunpack.c.l.b16 %v922
        %v962 = vunpack.c.l.b16 %v923
        %v963 = vunpack.c.l.b16 %v924
        %v964 = vunpack.c.l.b16 %v925
        %v965 = vunpack.c.l.b16 %v926
        %v966 = vunpack.c.l.b16 %v927
        %v967 = vunpack.c.l.b16 %v928
        %v968 = vunpack.c.l.b16 %v929
        %v969 = vunpack.c.l.b16 %v930
        %v970 = vunpack.c.l.b16 %v931
        %v971 = vpack.c.b16 %v956, %v955
        %v972 = vpack.c.b16 %v958, %v957
        %v973 = vpack.c.b16 %v960, %v959
        %v974 = vpack.c.b16 %v962, %v961
        %v975 = vpack.c.b16 %v964, %v963
        %v976 = vpack.c.b16 %v966, %v965
        %v977 = vpack.c.b16 %v968, %v967
        %v978 = vpack.c.b16 %v970, %v969
        %987 = vmatprep.subr.bf16.mxu0 0
        %988 = vmatpush1.bf16.msra.mxu0 %v978
        %989 = vmatprep.subr.bf16.mxu0 0
        %990 = vmatpush1.bf16.msra.mxu0 %v977
        %991 = vmatprep.subr.bf16.mxu0 0
        %992 = vmatpush1.bf16.msra.mxu0 %v976
        %993 = vmatprep.subr.bf16.mxu0 0
        %994 = vmatpush1.bf16.msra.mxu0 %v975
        %995 = vmatprep.subr.bf16.mxu0 0
        %996 = vmatpush1.bf16.msra.mxu0 %v974
        %997 = vmatprep.subr.bf16.mxu0 0
        %998 = vmatpush1.bf16.msra.mxu0 %v973
        %999 = vmatprep.subr.bf16.mxu0 0
        %1000 = vmatpush1.bf16.msra.mxu0 %v972
        %1001 = vmatprep.subr.bf16.mxu0 0
        %1002 = vmatpush1.bf16.msra.mxu0 %v971
        %1003 = vmatprep.subr.bf16.mxu0 0
        %1004 = vmatpush2.bf16.msra.mxu0 0
        %1005 = vmatprep.subr.bf16.mxu0 0
        %1006 = vmatpush2.bf16.msra.mxu0 0
        %1007 = vmatprep.subr.bf16.mxu0 0
        %1008 = vmatpush2.bf16.msra.mxu0 0
        %1009 = vmatprep.subr.bf16.mxu0 0
        %1010 = vmatpush2.bf16.msra.mxu0 0
        %1011 = vmatprep.subr.bf16.mxu0 0
        %1012 = vmatpush2.bf16.msra.mxu0 0
        %1013 = vmatprep.subr.bf16.mxu0 0
        %1014 = vmatpush2.bf16.msra.mxu0 0
        %1015 = vmatprep.subr.bf16.mxu0 0
        %1016 = vmatpush2.bf16.msra.mxu0 0
        %1017 = vmatprep.subr.bf16.mxu0 0
        %1018 = vmatpush2.bf16.msra.mxu0 0
        %1019 = vmatprep.mubr.bf16.mxu0 0
        %1020 = vmatmul.mubr.bf16.gmra.mxu0 %v908
        %v1021 = vpop.f32.mrf.mxu0
        %v1022 = vadd.f32 %v937, %v1021
        %v1023 = vpop.f32.mrf.mxu0
        %v1024 = vpop.f32.mrf.mxu0
        %v1025 = vadd.f32 %v937, %v1024
        %v1026 = vpop.f32.mrf.mxu0
        %1027 = vmatprep.mubr.bf16.mxu0 0
        %1028 = vmatmul.mubr.bf16.gmra.mxu0 %v909
        %v1029 = vpop.f32.mrf.mxu0
        %v1030 = vadd.f32 %v937, %v1029
        %v1031 = vpop.f32.mrf.mxu0
        %v1032 = vpop.f32.mrf.mxu0
        %v1033 = vadd.f32 %v937, %v1032
        %v1034 = vpop.f32.mrf.mxu0
        %1035 = vmatprep.mubr.bf16.mxu0 0
        %1036 = vmatmul.mubr.bf16.gmra.mxu0 %v910
        %v1037 = vpop.f32.mrf.mxu0
        %v1038 = vadd.f32 %v937, %v1037
        %v1039 = vpop.f32.mrf.mxu0
        %v1040 = vpop.f32.mrf.mxu0
        %v1041 = vadd.f32 %v937, %v1040
        %v1042 = vpop.f32.mrf.mxu0
        %1043 = vmatprep.mubr.bf16.mxu0 0
        %1044 = vmatmul.mubr.bf16.gmra.mxu0 %v911
        %v1045 = vpop.f32.mrf.mxu0
        %v1046 = vadd.f32 %v937, %v1045
        %v1047 = vpop.f32.mrf.mxu0
        %v1048 = vpop.f32.mrf.mxu0
        %v1049 = vadd.f32 %v937, %v1048
        %v1050 = vpop.f32.mrf.mxu0
        %1051 = vmatprep.mubr.bf16.mxu0 0
        %1052 = vmatmul.mubr.bf16.gmra.mxu0 %v912
        %v1053 = vpop.f32.mrf.mxu0
        %v1054 = vadd.f32 %v937, %v1053
        %v1055 = vpop.f32.mrf.mxu0
        %v1056 = vpop.f32.mrf.mxu0
        %v1057 = vadd.f32 %v937, %v1056
        %v1058 = vpop.f32.mrf.mxu0
        %1059 = vmatprep.mubr.bf16.mxu0 0
        %1060 = vmatmul.mubr.bf16.gmra.mxu0 %v913
        %v1061 = vpop.f32.mrf.mxu0
        %v1062 = vadd.f32 %v937, %v1061
        %v1063 = vpop.f32.mrf.mxu0
        %v1064 = vpop.f32.mrf.mxu0
        %v1065 = vadd.f32 %v937, %v1064
        %v1066 = vpop.f32.mrf.mxu0
        %1067 = vmatprep.mubr.bf16.mxu0 0
        %1068 = vmatmul.mubr.bf16.gmra.mxu0 %v914
        %v1069 = vpop.f32.mrf.mxu0
        %v1070 = vadd.f32 %v937, %v1069
        %v1071 = vpop.f32.mrf.mxu0
        %v1072 = vpop.f32.mrf.mxu0
        %v1073 = vadd.f32 %v937, %v1072
        %v1074 = vpop.f32.mrf.mxu0
        %1075 = vmatprep.mubr.bf16.mxu0 0
        %1076 = vmatmul.mubr.bf16.gmra.mxu0 %v915
        %v1077 = vpop.f32.mrf.mxu0
        %v1078 = vadd.f32 %v937, %v1077
        %v1079 = vpop.f32.mrf.mxu0
        %v1080 = vpop.f32.mrf.mxu0
        %v1081 = vadd.f32 %v937, %v1080
        %v1082 = vpop.f32.mrf.mxu0
        %1083 = vdwg.mxu0
        %v1084 = vmul.f32 %v1022, 0.5
        %v1085 = vmul.f32 %v1025, 0.5
        %v1086 = vmul.f32 %v1030, 0.5
        %v1087 = vmul.f32 %v1033, 0.5
        %v1088 = vmul.f32 %v1038, 0.5
        %v1089 = vmul.f32 %v1041, 0.5
        %v1090 = vmul.f32 %v1046, 0.5
        %v1091 = vmul.f32 %v1049, 0.5
        %v1092 = vmul.f32 %v1054, 0.5
        %v1093 = vmul.f32 %v1057, 0.5
        %v1094 = vmul.f32 %v1062, 0.5
        %v1095 = vmul.f32 %v1065, 0.5
        %v1096 = vmul.f32 %v1070, 0.5
        %v1097 = vmul.f32 %v1073, 0.5
        %v1098 = vmul.f32 %v1078, 0.5
        %v1099 = vmul.f32 %v1081, 0.5
        %v1100 = vtanh.pop %v1084
        %v1101 = vtanh.pop %v1085
        %v1102 = vtanh.pop %v1086
        %v1103 = vtanh.pop %v1087
        %v1104 = vtanh.pop %v1088
        %v1105 = vtanh.pop %v1089
        %v1106 = vtanh.pop %v1090
        %v1107 = vtanh.pop %v1091
        %v1108 = vtanh.pop %v1092
        %v1109 = vtanh.pop %v1093
        %v1110 = vtanh.pop %v1094
        %v1111 = vtanh.pop %v1095
        %v1112 = vtanh.pop %v1096
        %v1113 = vtanh.pop %v1097
        %v1114 = vtanh.pop %v1098
        %v1115 = vtanh.pop %v1099
        %v1116 = vmul.f32 %v1100, 0.5
        %v1117 = vmul.f32 %v1101, 0.5
        %v1118 = vmul.f32 %v1102, 0.5
        %v1119 = vmul.f32 %v1103, 0.5
        %v1120 = vmul.f32 %v1104, 0.5
        %v1121 = vmul.f32 %v1105, 0.5
        %v1122 = vmul.f32 %v1106, 0.5
        %v1123 = vmul.f32 %v1107, 0.5
        %v1124 = vmul.f32 %v1108, 0.5
        %v1125 = vmul.f32 %v1109, 0.5
        %v1126 = vmul.f32 %v1110, 0.5
        %v1127 = vmul.f32 %v1111, 0.5
        %v1128 = vmul.f32 %v1112, 0.5
        %v1129 = vmul.f32 %v1113, 0.5
        %v1130 = vmul.f32 %v1114, 0.5
        %v1131 = vmul.f32 %v1115, 0.5
        %v1132 = vadd.f32 %v1116, 0.5
        %v1133 = vadd.f32 %v1117, 0.5
        %v1134 = vadd.f32 %v1118, 0.5
        %v1135 = vadd.f32 %v1119, 0.5
        %v1136 = vadd.f32 %v1120, 0.5
        %v1137 = vadd.f32 %v1121, 0.5
        %v1138 = vadd.f32 %v1122, 0.5
        %v1139 = vadd.f32 %v1123, 0.5
        %v1140 = vadd.f32 %v1124, 0.5
        %v1141 = vadd.f32 %v1125, 0.5
        %v1142 = vadd.f32 %v1126, 0.5
        %v1143 = vadd.f32 %v1127, 0.5
        %v1144 = vadd.f32 %v1128, 0.5
        %v1145 = vadd.f32 %v1129, 0.5
        %v1146 = vadd.f32 %v1130, 0.5
        %v1147 = vadd.f32 %v1131, 0.5
        %v1148 = vpack.c.bf16 %v1133, %v1132
        %v1149 = vpack.c.bf16 %v1135, %v1134
        %v1150 = vpack.c.bf16 %v1137, %v1136
        %v1151 = vpack.c.bf16 %v1139, %v1138
        %v1152 = vpack.c.bf16 %v1141, %v1140
        %v1153 = vpack.c.bf16 %v1143, %v1142
        %v1154 = vpack.c.bf16 %v1145, %v1144
        %v1155 = vpack.c.bf16 %v1147, %v1146
        %v1156 = vld [vmem:[#allocation10] sm:$0xf]
        %v1157 = vld [vmem:[#allocation10 + $0x4] sm:$0xf]
        %v1158 = vld [vmem:[#allocation10 + $0x8] sm:$0xf]
        %v1159 = vld [vmem:[#allocation10 + $0xc] sm:$0xf]
        %v1160 = vld [vmem:[#allocation10 + $0x10] sm:$0xf]
        %v1161 = vld [vmem:[#allocation10 + $0x14] sm:$0xf]
        %v1162 = vld [vmem:[#allocation10 + $0x18] sm:$0xf]
        %v1163 = vld [vmem:[#allocation10 + $0x1c] sm:$0xf]
        %v1164 = vld [vmem:[#allocation10 + $0x20] sm:$0xf]
        %v1165 = vld [vmem:[#allocation10 + $0x24] sm:$0xf]
        %v1166 = vld [vmem:[#allocation10 + $0x28] sm:$0xf]
        %v1167 = vld [vmem:[#allocation10 + $0x2c] sm:$0xf]
        %v1168 = vld [vmem:[#allocation10 + $0x30] sm:$0xf]
        %v1169 = vld [vmem:[#allocation10 + $0x34] sm:$0xf]
        %v1170 = vld [vmem:[#allocation10 + $0x38] sm:$0xf]
        %v1171 = vld [vmem:[#allocation10 + $0x3c] sm:$0xf]
        %v1172 = vld [vmem:[%s8] sm:$0x1]
        %v1174 = vlaneseq
        %v1175 = vshrl.u32 %v1174, 7
        %v1176 = vsub.s32 0, %v1175
        %v1177 = vrot.slane %v1172, %v1176
        %v1195 = vunpack.c.l.b16 %v1156
        %v1196 = vunpack.c.l.b16 %v1157
        %v1197 = vunpack.c.l.b16 %v1158
        %v1198 = vunpack.c.l.b16 %v1159
        %v1199 = vunpack.c.l.b16 %v1160
        %v1200 = vunpack.c.l.b16 %v1161
        %v1201 = vunpack.c.l.b16 %v1162
        %v1202 = vunpack.c.l.b16 %v1163
        %v1203 = vunpack.c.l.b16 %v1164
        %v1204 = vunpack.c.l.b16 %v1165
        %v1205 = vunpack.c.l.b16 %v1166
        %v1206 = vunpack.c.l.b16 %v1167
        %v1207 = vunpack.c.l.b16 %v1168
        %v1208 = vunpack.c.l.b16 %v1169
        %v1209 = vunpack.c.l.b16 %v1170
        %v1210 = vunpack.c.l.b16 %v1171
        %v1211 = vpack.c.b16 %v1196, %v1195
        %v1212 = vpack.c.b16 %v1198, %v1197
        %v1213 = vpack.c.b16 %v1200, %v1199
        %v1214 = vpack.c.b16 %v1202, %v1201
        %v1215 = vpack.c.b16 %v1204, %v1203
        %v1216 = vpack.c.b16 %v1206, %v1205
        %v1217 = vpack.c.b16 %v1208, %v1207
        %v1218 = vpack.c.b16 %v1210, %v1209
        %1227 = vmatprep.subr.bf16.mxu0 0
        %1228 = vmatpush1.bf16.msra.mxu0 %v1218
        %1229 = vmatprep.subr.bf16.mxu0 0
        %1230 = vmatpush1.bf16.msra.mxu0 %v1217
        %1231 = vmatprep.subr.bf16.mxu0 0
        %1232 = vmatpush1.bf16.msra.mxu0 %v1216
        %1233 = vmatprep.subr.bf16.mxu0 0
        %1234 = vmatpush1.bf16.msra.mxu0 %v1215
        %1235 = vmatprep.subr.bf16.mxu0 0
        %1236 = vmatpush1.bf16.msra.mxu0 %v1214
        %1237 = vmatprep.subr.bf16.mxu0 0
        %1238 = vmatpush1.bf16.msra.mxu0 %v1213
        %1239 = vmatprep.subr.bf16.mxu0 0
        %1240 = vmatpush1.bf16.msra.mxu0 %v1212
        %1241 = vmatprep.subr.bf16.mxu0 0
        %1242 = vmatpush1.bf16.msra.mxu0 %v1211
        %1243 = vmatprep.subr.bf16.mxu0 0
        %1244 = vmatpush2.bf16.msra.mxu0 0
        %1245 = vmatprep.subr.bf16.mxu0 0
        %1246 = vmatpush2.bf16.msra.mxu0 0
        %1247 = vmatprep.subr.bf16.mxu0 0
        %1248 = vmatpush2.bf16.msra.mxu0 0
        %1249 = vmatprep.subr.bf16.mxu0 0
        %1250 = vmatpush2.bf16.msra.mxu0 0
        %1251 = vmatprep.subr.bf16.mxu0 0
        %1252 = vmatpush2.bf16.msra.mxu0 0
        %1253 = vmatprep.subr.bf16.mxu0 0
        %1254 = vmatpush2.bf16.msra.mxu0 0
        %1255 = vmatprep.subr.bf16.mxu0 0
        %1256 = vmatpush2.bf16.msra.mxu0 0
        %1257 = vmatprep.subr.bf16.mxu0 0
        %1258 = vmatpush2.bf16.msra.mxu0 0
        %1259 = vmatprep.mubr.bf16.mxu0 0
        %1260 = vmatmul.mubr.bf16.gmra.mxu0 %v1148
        %v1261 = vpop.f32.mrf.mxu0
        %v1262 = vadd.f32 %v1177, %v1261
        %v1263 = vpop.f32.mrf.mxu0
        %v1264 = vpop.f32.mrf.mxu0
        %v1265 = vadd.f32 %v1177, %v1264
        %v1266 = vpop.f32.mrf.mxu0
        %1267 = vmatprep.mubr.bf16.mxu0 0
        %1268 = vmatmul.mubr.bf16.gmra.mxu0 %v1149
        %v1269 = vpop.f32.mrf.mxu0
        %v1270 = vadd.f32 %v1177, %v1269
        %v1271 = vpop.f32.mrf.mxu0
        %v1272 = vpop.f32.mrf.mxu0
        %v1273 = vadd.f32 %v1177, %v1272
        %v1274 = vpop.f32.mrf.mxu0
        %1275 = vmatprep.mubr.bf16.mxu0 0
        %1276 = vmatmul.mubr.bf16.gmra.mxu0 %v1150
        %v1277 = vpop.f32.mrf.mxu0
        %v1278 = vadd.f32 %v1177, %v1277
        %v1279 = vpop.f32.mrf.mxu0
        %v1280 = vpop.f32.mrf.mxu0
        %v1281 = vadd.f32 %v1177, %v1280
        %v1282 = vpop.f32.mrf.mxu0
        %1283 = vmatprep.mubr.bf16.mxu0 0
        %1284 = vmatmul.mubr.bf16.gmra.mxu0 %v1151
        %v1285 = vpop.f32.mrf.mxu0
        %v1286 = vadd.f32 %v1177, %v1285
        %v1287 = vpop.f32.mrf.mxu0
        %v1288 = vpop.f32.mrf.mxu0
        %v1289 = vadd.f32 %v1177, %v1288
        %v1290 = vpop.f32.mrf.mxu0
        %1291 = vmatprep.mubr.bf16.mxu0 0
        %1292 = vmatmul.mubr.bf16.gmra.mxu0 %v1152
        %v1293 = vpop.f32.mrf.mxu0
        %v1294 = vadd.f32 %v1177, %v1293
        %v1295 = vpop.f32.mrf.mxu0
        %v1296 = vpop.f32.mrf.mxu0
        %v1297 = vadd.f32 %v1177, %v1296
        %v1298 = vpop.f32.mrf.mxu0
        %1299 = vmatprep.mubr.bf16.mxu0 0
        %1300 = vmatmul.mubr.bf16.gmra.mxu0 %v1153
        %v1301 = vpop.f32.mrf.mxu0
        %v1302 = vadd.f32 %v1177, %v1301
        %v1303 = vpop.f32.mrf.mxu0
        %v1304 = vpop.f32.mrf.mxu0
        %v1305 = vadd.f32 %v1177, %v1304
        %v1306 = vpop.f32.mrf.mxu0
        %1307 = vmatprep.mubr.bf16.mxu0 0
        %1308 = vmatmul.mubr.bf16.gmra.mxu0 %v1154
        %v1309 = vpop.f32.mrf.mxu0
        %v1310 = vadd.f32 %v1177, %v1309
        %v1311 = vpop.f32.mrf.mxu0
        %v1312 = vpop.f32.mrf.mxu0
        %v1313 = vadd.f32 %v1177, %v1312
        %v1314 = vpop.f32.mrf.mxu0
        %1315 = vmatprep.mubr.bf16.mxu0 0
        %1316 = vmatmul.mubr.bf16.gmra.mxu0 %v1155
        %v1317 = vpop.f32.mrf.mxu0
        %v1318 = vadd.f32 %v1177, %v1317
        %v1319 = vpop.f32.mrf.mxu0
        %v1320 = vpop.f32.mrf.mxu0
        %v1321 = vadd.f32 %v1177, %v1320
        %v1322 = vpop.f32.mrf.mxu0
        %1323 = vdwg.mxu0
        %v1324 = vmul.f32 %v1262, 0.5
        %v1325 = vmul.f32 %v1265, 0.5
        %v1326 = vmul.f32 %v1270, 0.5
        %v1327 = vmul.f32 %v1273, 0.5
        %v1328 = vmul.f32 %v1278, 0.5
        %v1329 = vmul.f32 %v1281, 0.5
        %v1330 = vmul.f32 %v1286, 0.5
        %v1331 = vmul.f32 %v1289, 0.5
        %v1332 = vmul.f32 %v1294, 0.5
        %v1333 = vmul.f32 %v1297, 0.5
        %v1334 = vmul.f32 %v1302, 0.5
        %v1335 = vmul.f32 %v1305, 0.5
        %v1336 = vmul.f32 %v1310, 0.5
        %v1337 = vmul.f32 %v1313, 0.5
        %v1338 = vmul.f32 %v1318, 0.5
        %v1339 = vmul.f32 %v1321, 0.5
        %v1340 = vtanh.pop %v1324
        %v1341 = vtanh.pop %v1325
        %v1342 = vtanh.pop %v1326
        %v1343 = vtanh.pop %v1327
        %v1344 = vtanh.pop %v1328
        %v1345 = vtanh.pop %v1329
        %v1346 = vtanh.pop %v1330
        %v1347 = vtanh.pop %v1331
        %v1348 = vtanh.pop %v1332
        %v1349 = vtanh.pop %v1333
        %v1350 = vtanh.pop %v1334
        %v1351 = vtanh.pop %v1335
        %v1352 = vtanh.pop %v1336
        %v1353 = vtanh.pop %v1337
        %v1354 = vtanh.pop %v1338
        %v1355 = vtanh.pop %v1339
        %v1356 = vmul.f32 %v1340, 0.5
        %v1357 = vmul.f32 %v1341, 0.5
        %v1358 = vmul.f32 %v1342, 0.5
        %v1359 = vmul.f32 %v1343, 0.5
        %v1360 = vmul.f32 %v1344, 0.5
        %v1361 = vmul.f32 %v1345, 0.5
        %v1362 = vmul.f32 %v1346, 0.5
        %v1363 = vmul.f32 %v1347, 0.5
        %v1364 = vmul.f32 %v1348, 0.5
        %v1365 = vmul.f32 %v1349, 0.5
        %v1366 = vmul.f32 %v1350, 0.5
        %v1367 = vmul.f32 %v1351, 0.5
        %v1368 = vmul.f32 %v1352, 0.5
        %v1369 = vmul.f32 %v1353, 0.5
        %v1370 = vmul.f32 %v1354, 0.5
        %v1371 = vmul.f32 %v1355, 0.5
        %v1372 = vadd.f32 %v1356, 0.5
        %v1373 = vadd.f32 %v1357, 0.5
        %v1374 = vadd.f32 %v1358, 0.5
        %v1375 = vadd.f32 %v1359, 0.5
        %v1376 = vadd.f32 %v1360, 0.5
        %v1377 = vadd.f32 %v1361, 0.5
        %v1378 = vadd.f32 %v1362, 0.5
        %v1379 = vadd.f32 %v1363, 0.5
        %v1380 = vadd.f32 %v1364, 0.5
        %v1381 = vadd.f32 %v1365, 0.5
        %v1382 = vadd.f32 %v1366, 0.5
        %v1383 = vadd.f32 %v1367, 0.5
        %v1384 = vadd.f32 %v1368, 0.5
        %v1385 = vadd.f32 %v1369, 0.5
        %v1386 = vadd.f32 %v1370, 0.5
        %v1387 = vadd.f32 %v1371, 0.5
        %1388 = vst [vmem:[%s408] sm:$0xff] %v1372
        %1389 = vst [vmem:[%s408 + $0x8] sm:$0xff] %v1373
        %1390 = vst [vmem:[%s408 + $0x10] sm:$0xff] %v1374
        %1391 = vst [vmem:[%s408 + $0x18] sm:$0xff] %v1375
        %1392 = vst [vmem:[%s408 + $0x20] sm:$0xff] %v1376
        %1393 = vst [vmem:[%s408 + $0x28] sm:$0xff] %v1377
        %1394 = vst [vmem:[%s408 + $0x30] sm:$0xff] %v1378
        %1395 = vst [vmem:[%s408 + $0x38] sm:$0xff] %v1379
        %1396 = vst [vmem:[%s408 + $0x40] sm:$0xff] %v1380
        %1397 = vst [vmem:[%s408 + $0x48] sm:$0xff] %v1381
        %1398 = vst [vmem:[%s408 + $0x50] sm:$0xff] %v1382
        %1399 = vst [vmem:[%s408 + $0x58] sm:$0xff] %v1383
        %1400 = vst [vmem:[%s408 + $0x60] sm:$0xff] %v1384
        %1401 = vst [vmem:[%s408 + $0x68] sm:$0xff] %v1385
        %1402 = vst [vmem:[%s408 + $0x70] sm:$0xff] %v1386
        %1403 = vst [vmem:[%s408 + $0x78] sm:$0xff] %v1387
        %s1404 = sand.u32 %s230, 1
        %s1405 = scalar_lea.sflag [#allocation4], %s1404
        %s1406 = sand.u32 %s230, 1
        %s1407 = smul.addr %s1406, 128
        %s1408 = scalar_lea.vmem [#allocation11], %s1407
        // Predicated region
        $region77: #{tpu_custom_call.1} parent=55 // pred_check
          %p1409 = pneg %p240
        $region78: #{tpu_custom_call.1} parent=55 // pred_check_branch
          %1411 = sbr.rel (%p1409) target = $region80
        $region79: #{tpu_custom_call.1} parent=55 // pred_region
          %s1412 = smul.u32 16, %s28
          %s1414 = ssub.s32 2048, 2048
          %1415 = vsyncadd %s1405, %s1414
          %s1416 = smul.addr %s1412, 128
          %s1417 = scalar_lea.hbm %s9, %s1416
          %s1418 = sshll.u32 %s1408, 4
          %s1419 = int_to_ptr.vmem [resolvable:$true] %s1418
          %1424 = dma.vmem_to_hbm [thread:$0]  %s1419, 2048, %s1417, %s1405, 128, 128, 8
        $region80: #{tpu_custom_call.1} parent=55 // pred_fallthru
          _
      $region56: #{tpu_custom_call.1} parent=5 // pred_fallthru
        _
      %p1425 = scmp.le.s32.totalorder 2, %s23
      // Predicated region
      $region81: #{tpu_custom_call.1} parent=5 // pred_check
        %p1426 = pneg %p1425
      $region82: #{tpu_custom_call.1} parent=5 // pred_check_branch
        %1428 = sbr.rel (%p1426) target = $region84
      $region83: #{tpu_custom_call.1} parent=5 // pred_region
        %s1429 = ssub.s32 %s23, 2
        // Predicated region
        $region85: #{tpu_custom_call.1} parent=83 // pred_check
          %p1430 = pneg %p246
        $region86: #{tpu_custom_call.1} parent=83 // pred_check_branch
          %1432 = sbr.rel (%p1430) target = $region88
        $region87: #{tpu_custom_call.1} parent=83 // pred_region
          %s1433 = sand.u32 %s231, 1
          %s1434 = scalar_lea.sflag [#allocation4], %s1433
          %s1435 = sand.u32 %s231, 1
          %s1436 = smul.addr %s1435, 128
          %s1437 = scalar_lea.vmem [#allocation11], %s1436
          %1438 = dma.done %s1434, 2048
        $region88: #{tpu_custom_call.1} parent=83 // pred_fallthru
          _
      $region84: #{tpu_custom_call.1} parent=5 // pred_fallthru
        _
    $region6: #{tpu_custom_call.1} parent=1 // loop_footer
      %s27 = sadd.s32 1, %s23
    $region7: #{tpu_custom_call.1} parent=1 // loop_footer_branch
      %22 = sbr.rel target = $region3
    $region8: #{tpu_custom_call.1} parent=1 // loop_exit
      _
    %1439 = vsyncpa [#allocation3], 1
    %s1440 = scalar_lea.sflag [#allocation3], 1
    %1441 = vsyncpa %s1440, 1
    %1442 = vsyncpa [#allocation6], 1
    %1443 = vsyncpa [#allocation9], 1
    %1444 = vsyncpa [#allocation4], 1
    %s1445 = scalar_lea.sflag [#allocation4], 1
    %1446 = vsyncpa %s1445, 1

</llo_original>
